<compile_context>
chip_gen: v5e
topology: v5e:2x2
jax: 0.10.0
libtpu: 0.0.40
codegen_flags: <defaults>
</compile_context>

<pallas_src>
import functools
import math

import jax
import jax.numpy as jnp
from jax.experimental import pallas as pl
from jax.experimental.pallas import tpu as pltpu

EPS = 1e-5  # PyTorch nn.LayerNorm default eps


def clip_layer_kernel(x_ref, wqkv_ref, bqkv_ref, wo_ref, w1_ref, b1_ref,
                      w2_ref, vecs_ref, o_ref, *, n_head):
    mdt = wqkv_ref.dtype                          # matmul operand dtype (bf16)
    xb = x_ref[...].astype(jnp.float32)           # (Bt, S, D)
    Bt, S, D = xb.shape
    d_head = D // n_head
    scale = 1.0 / math.sqrt(d_head)
    T = Bt * S

    x = xb.reshape(T, D)                          # token-major (Bt*S, D)

    # Packed small vectors: rows = [bo, g1, be1, b2, g2, be2], each (1, D).
    vecs = vecs_ref[...].astype(jnp.float32)      # (6, D)
    bo, g1, be1, b2, g2, be2 = (vecs[i:i + 1, :] for i in range(6))

    # ---------------- causal multi-head self-attention ----------------
    qkv = jnp.dot(x.astype(mdt), wqkv_ref[...],
                  preferred_element_type=jnp.float32)
    qkv = qkv + bqkv_ref[...].astype(jnp.float32)          # (T, 3D) fp32

    q = (qkv[:, :D] * scale).astype(mdt)                    # scale q up front
    k = qkv[:, D:2 * D].astype(mdt)
    v = qkv[:, 2 * D:].astype(mdt)

    def split_heads(t):                                      # (T, D) -> (Bt*H, S, dh)
        t = t.reshape(Bt, S, n_head, d_head)
        t = jnp.transpose(t, (0, 2, 1, 3))
        return t.reshape(Bt * n_head, S, d_head)

    qh, kh, vh = split_heads(q), split_heads(k), split_heads(v)

    s = jnp.einsum('bqd,bkd->bqk', qh, kh,
                   preferred_element_type=jnp.float32)       # (Bt*H, S, S)

    # causal mask built once per grid step, broadcast over the batch*head dim
    row = jax.lax.broadcasted_iota(jnp.int32, (S, S), 0)
    col = jax.lax.broadcasted_iota(jnp.int32, (S, S), 1)
    s = jnp.where(col > row, jnp.float32(-1e30), s)

    s = s - jnp.max(s, axis=-1, keepdims=True)
    p = jnp.exp(s)
    p = p * pl.reciprocal(jnp.sum(p, axis=-1, keepdims=True), approx=True)

    o = jnp.einsum('bqk,bkd->bqd', p.astype(mdt), vh,
                   preferred_element_type=jnp.float32)       # (Bt*H, S, dh)
    o = o.astype(mdt).reshape(Bt, n_head, S, d_head)
    o = jnp.transpose(o, (0, 2, 1, 3)).reshape(T, D)         # merge heads
    attn = jnp.dot(o, wo_ref[...], preferred_element_type=jnp.float32) + bo

    # ---------------- residual + LayerNorm1 (post-norm) ----------------
    def layer_norm(y, g, b):
        mu = jnp.mean(y, axis=-1, keepdims=True)
        var = jnp.mean(jnp.square(y - mu), axis=-1, keepdims=True)
        return (y - mu) * jax.lax.rsqrt(var + EPS) * g + b

    x = layer_norm(attn + x, g1, be1)

    # ---------------- MLP with QuickGELU ----------------
    h = jnp.dot(x.astype(mdt), w1_ref[...],
                preferred_element_type=jnp.float32)
    h = h + b1_ref[...].astype(jnp.float32)
    h = h * jax.nn.sigmoid(1.702 * h)
    h = jnp.dot(h.astype(mdt), w2_ref[...],
                preferred_element_type=jnp.float32) + b2

    # ---------------- residual + LayerNorm2 ----------------
    y = layer_norm(h + x, g2, be2)

    o_ref[...] = y.reshape(Bt, S, D).astype(o_ref.dtype)


def clip_layer(x, params, n_head, *, block_b=None, matmul_dtype=jnp.bfloat16):
    """params = (wqkv, bqkv, wo, bo, g1, be1, w1, b1, w2, b2, g2, be2)."""
    wqkv, bqkv, wo, bo, g1, be1, w1, b1, w2, b2, g2, be2 = params
    B, S, D = x.shape
    assert D % n_head == 0

    if block_b is None:
        block_b = next(bb for bb in (8, 4, 2, 1) if B % bb == 0)
    assert B % block_b == 0
    grid = (B // block_b,)

    # bf16 weights for the MXU (fp32 accumulation inside the kernel); small
    # bias / LN vectors stay fp32 and are packed to cut per-step DMA overhead.
    wqkv_c = wqkv.astype(matmul_dtype)
    wo_c = wo.astype(matmul_dtype)
    w1_c = w1.astype(matmul_dtype)
    w2_c = w2.astype(matmul_dtype)
    bqkv_c = bqkv.astype(jnp.float32)
    b1_c = b1.astype(jnp.float32)
    vecs = jnp.concatenate(
        [bo, g1, be1, b2, g2, be2], axis=0).astype(jnp.float32)   # (6, D)

    def const_spec(arr):
        zeros = (0,) * arr.ndim
        return pl.BlockSpec(arr.shape, lambda b, _z=zeros: _z)

    kernel = functools.partial(clip_layer_kernel, n_head=n_head)

    return pl.pallas_call(
        kernel,
        out_shape=jax.ShapeDtypeStruct((B, S, D), x.dtype),
        grid_spec=pltpu.PrefetchScalarGridSpec(
            num_scalar_prefetch=0,
            grid=grid,
            in_specs=[
                pl.BlockSpec((block_b, S, D), lambda b: (b, 0, 0)),
                const_spec(wqkv_c),
                const_spec(bqkv_c),
                const_spec(wo_c),
                const_spec(w1_c),
                const_spec(b1_c),
                const_spec(w2_c),
                const_spec(vecs),
            ],
            out_specs=pl.BlockSpec((block_b, S, D), lambda b: (b, 0, 0)),
        ),
        compiler_params=pltpu.CompilerParams(
            dimension_semantics=("parallel",),
            vmem_limit_bytes=64 * 1024 * 1024,
        ),
    )(x, wqkv_c, bqkv_c, wo_c, w1_c, b1_c, w2_c, vecs)


def clip_layer_ref(x, params, n_head):
    """Pure-JAX fp32 reference matching the PyTorch forward."""
    wqkv, bqkv, wo, bo, g1, be1, w1, b1, w2, b2, g2, be2 = params
    B, S, D = x.shape
    dh = D // n_head

    qkv = x @ wqkv + bqkv
    q, k, v = jnp.split(qkv, 3, axis=-1)
    to_heads = lambda t: t.reshape(B, S, n_head, dh).transpose(0, 2, 1, 3)
    q, k, v = to_heads(q), to_heads(k), to_heads(v)
    s = jnp.einsum('bhqd,bhkd->bhqk', q, k)
    mask = jnp.triu(jnp.ones((S, S), bool), 1)
    s = jnp.where(mask, -jnp.inf, s) / math.sqrt(dh)
    p = jax.nn.softmax(s, axis=-1)
    o = jnp.einsum('bhqk,bhkd->bhqd', p, v).transpose(0, 2, 1, 3).reshape(B, S, D)
    attn = o @ wo + bo

    def ln(y, g, b):
        mu = y.mean(-1, keepdims=True)
        var = ((y - mu) ** 2).mean(-1, keepdims=True)
        return (y - mu) / jnp.sqrt(var + EPS) * g + b

    x = ln(attn + x, g1, be1)
    r = x
    h = x @ w1 + b1
    h = h * jax.nn.sigmoid(1.702 * h)
    h = h @ w2 + b2
    return ln(h + r, g2, be2)


if __name__ == "__main__":
    B, S, D, n_head = 2, 8, 32, 4

    key = jax.random.PRNGKey(0)
    ks = jax.random.split(key, 16)
    std = 0.02
    # parameter shapes mirror nn.Linear / nn.LayerNorm in the module
    wqkv = std * jax.random.normal(ks[0], (D, 3 * D), jnp.float32)      # in_proj (transposed)
    bqkv = std * jax.random.normal(ks[1], (1, 3 * D), jnp.float32)
    wo   = std * jax.random.normal(ks[2], (D, D), jnp.float32)          # out_proj
    bo   = std * jax.random.normal(ks[3], (1, D), jnp.float32)
    g1   = 1.0 + std * jax.random.normal(ks[4], (1, D), jnp.float32)    # layer_norm1
    be1  = std * jax.random.normal(ks[5], (1, D), jnp.float32)
    w1   = std * jax.random.normal(ks[6], (D, 4 * D), jnp.float32)      # linear1
    b1   = std * jax.random.normal(ks[7], (1, 4 * D), jnp.float32)
    w2   = std * jax.random.normal(ks[8], (4 * D, D), jnp.float32)      # linear2
    b2   = std * jax.random.normal(ks[9], (1, D), jnp.float32)
    g2   = 1.0 + std * jax.random.normal(ks[10], (1, D), jnp.float32)   # layer_norm2
    be2  = std * jax.random.normal(ks[11], (1, D), jnp.float32)
    params = (wqkv, bqkv, wo, bo, g1, be1, w1, b1, w2, b2, g2, be2)

    x = jax.random.normal(ks[12], (B, S, D), jnp.float32)

    out = clip_layer(x, params, n_head)
    out = jax.block_until_ready(out)

    ref = clip_layer_ref(x, params, n_head)
    assert out.shape == (B, S, D)
    max_diff = jnp.max(jnp.abs(out - ref))
    # bf16 matmul operands (fp32 accumulation) vs fp32 reference -> relaxed tol
    assert jnp.allclose(out, ref, atol=2e-2, rtol=2e-2), (
        f"mismatch: max abs diff {max_diff}")

    print("KERNEL_OK")
</pallas_src>

<mosaic_0001>
module attributes {stable_mosaic.version = 11 : i64} {
  func.func @clip_layer_kernel(%arg0: i32, %arg1: memref<2x8x32xf32, #tpu.memory_space<vmem>>, %arg2: memref<32x96xbf16, #tpu.memory_space<vmem>>, %arg3: memref<1x96xf32, #tpu.memory_space<vmem>>, %arg4: memref<32x32xbf16, #tpu.memory_space<vmem>>, %arg5: memref<32x128xbf16, #tpu.memory_space<vmem>>, %arg6: memref<1x128xf32, #tpu.memory_space<vmem>>, %arg7: memref<128x32xbf16, #tpu.memory_space<vmem>>, %arg8: memref<6x32xf32, #tpu.memory_space<vmem>>, %arg9: memref<2x8x32xf32, #tpu.memory_space<vmem>>) attributes {dimension_semantics = [#tpu.dimension_semantics<parallel>], iteration_bounds = array<i64: 1>, scalar_prefetch = 0 : i64, scratch_operands = 0 : i64, tpu.core_type = #tpu.core_type<tc>, window_params = [{transform_indices = @transform_0, window_bounds = array<i64: 2, 8, 32>}, {pipeline_mode = #tpu.pipeline_mode<synchronous>, transform_indices = @transform_1, window_bounds = array<i64: 32, 96>}, {pipeline_mode = #tpu.pipeline_mode<synchronous>, transform_indices = @transform_2, window_bounds = array<i64: 1, 96>}, {pipeline_mode = #tpu.pipeline_mode<synchronous>, transform_indices = @transform_3, window_bounds = array<i64: 32, 32>}, {pipeline_mode = #tpu.pipeline_mode<synchronous>, transform_indices = @transform_4, window_bounds = array<i64: 32, 128>}, {pipeline_mode = #tpu.pipeline_mode<synchronous>, transform_indices = @transform_5, window_bounds = array<i64: 1, 128>}, {pipeline_mode = #tpu.pipeline_mode<synchronous>, transform_indices = @transform_6, window_bounds = array<i64: 128, 32>}, {pipeline_mode = #tpu.pipeline_mode<synchronous>, transform_indices = @transform_7, window_bounds = array<i64: 6, 32>}, {transform_indices = @transform_8, window_bounds = array<i64: 2, 8, 32>}]} {
    %c0 = arith.constant 0 : index
    %c0_0 = arith.constant 0 : index
    %c0_1 = arith.constant 0 : index
    %0 = vector.load %arg1[%c0, %c0_0, %c0_1] : memref<2x8x32xf32, #tpu.memory_space<vmem>>, vector<2x8x32xf32>
    %1 = vector.shape_cast %0 : vector<2x8x32xf32> to vector<16x32xf32>
    %c0_2 = arith.constant 0 : index
    %c0_3 = arith.constant 0 : index
    %2 = vector.load %arg8[%c0_2, %c0_3] : memref<6x32xf32, #tpu.memory_space<vmem>>, vector<6x32xf32>
    %3 = vector.extract_strided_slice %2 {offsets = [0, 0], sizes = [1, 32], strides = [1, 1]} : vector<6x32xf32> to vector<1x32xf32>
    %4 = vector.extract_strided_slice %2 {offsets = [1, 0], sizes = [1, 32], strides = [1, 1]} : vector<6x32xf32> to vector<1x32xf32>
    %5 = vector.extract_strided_slice %2 {offsets = [2, 0], sizes = [1, 32], strides = [1, 1]} : vector<6x32xf32> to vector<1x32xf32>
    %6 = vector.extract_strided_slice %2 {offsets = [3, 0], sizes = [1, 32], strides = [1, 1]} : vector<6x32xf32> to vector<1x32xf32>
    %7 = vector.extract_strided_slice %2 {offsets = [4, 0], sizes = [1, 32], strides = [1, 1]} : vector<6x32xf32> to vector<1x32xf32>
    %8 = vector.extract_strided_slice %2 {offsets = [5, 0], sizes = [1, 32], strides = [1, 1]} : vector<6x32xf32> to vector<1x32xf32>
    %9 = arith.truncf %1 : vector<16x32xf32> to vector<16x32xbf16>
    %c0_4 = arith.constant 0 : index
    %c0_5 = arith.constant 0 : index
    %10 = vector.load %arg2[%c0_4, %c0_5] : memref<32x96xbf16, #tpu.memory_space<vmem>>, vector<32x96xbf16>
    %cst = arith.constant dense<0.000000e+00> : vector<16x96xf32>
    %11 = tpu.matmul %9, %10, %cst {dimension_numbers = #tpu.dot_dimension_numbers<[1], [0], [0], [1], [0, 0, 1, 1], [], []>} : vector<16x32xbf16>, vector<32x96xbf16>, vector<16x96xf32> -> vector<16x96xf32>
    %c0_6 = arith.constant 0 : index
    %c0_7 = arith.constant 0 : index
    %12 = vector.load %arg3[%c0_6, %c0_7] : memref<1x96xf32, #tpu.memory_space<vmem>>, vector<1x96xf32>
    %13 = vector.broadcast %12 : vector<1x96xf32> to vector<16x96xf32>
    %14 = arith.addf %11, %13 : vector<16x96xf32>
    %15 = vector.extract_strided_slice %14 {offsets = [0, 0], sizes = [16, 32], strides = [1, 1]} : vector<16x96xf32> to vector<16x32xf32>
    %cst_8 = arith.constant 0.353553385 : f32
    %16 = vector.broadcast %cst_8 : f32 to vector<16x32xf32>
    %17 = arith.mulf %15, %16 : vector<16x32xf32>
    %18 = arith.truncf %17 : vector<16x32xf32> to vector<16x32xbf16>
    %19 = vector.extract_strided_slice %14 {offsets = [0, 32], sizes = [16, 32], strides = [1, 1]} : vector<16x96xf32> to vector<16x32xf32>
    %20 = arith.truncf %19 : vector<16x32xf32> to vector<16x32xbf16>
    %21 = vector.extract_strided_slice %14 {offsets = [0, 64], sizes = [16, 32], strides = [1, 1]} : vector<16x96xf32> to vector<16x32xf32>
    %22 = arith.truncf %21 : vector<16x32xf32> to vector<16x32xbf16>
    %23 = vector.shape_cast %18 : vector<16x32xbf16> to vector<2x8x4x8xbf16>
    %24 = tpu.transpose %23, [0, 2, 1, 3] : vector<2x8x4x8xbf16> -> vector<2x4x8x8xbf16>
    %25 = vector.shape_cast %24 : vector<2x4x8x8xbf16> to vector<8x8x8xbf16>
    %26 = vector.shape_cast %20 : vector<16x32xbf16> to vector<2x8x4x8xbf16>
    %27 = tpu.transpose %26, [0, 2, 1, 3] : vector<2x8x4x8xbf16> -> vector<2x4x8x8xbf16>
    %28 = vector.shape_cast %27 : vector<2x4x8x8xbf16> to vector<8x8x8xbf16>
    %29 = vector.shape_cast %22 : vector<16x32xbf16> to vector<2x8x4x8xbf16>
    %30 = tpu.transpose %29, [0, 2, 1, 3] : vector<2x8x4x8xbf16> -> vector<2x4x8x8xbf16>
    %31 = vector.shape_cast %30 : vector<2x4x8x8xbf16> to vector<8x8x8xbf16>
    "tpu.trace_start"() <{level = 10 : i32, message = "bqd,bkd->bqk"}> : () -> ()
    %cst_9 = arith.constant dense<0.000000e+00> : vector<8x8x8xf32>
    %32 = tpu.matmul %25, %28, %cst_9 {dimension_numbers = #tpu.dot_dimension_numbers<[2], [2], [1], [1], [0, 0, 0, 1, 1, 1], [0], [0]>} : vector<8x8x8xbf16>, vector<8x8x8xbf16>, vector<8x8x8xf32> -> vector<8x8x8xf32>
    "tpu.trace_stop"() : () -> ()
    %33 = tpu.iota {dimensions = array<i32: 0>} : vector<8x8xi32>
    %34 = tpu.iota {dimensions = array<i32: 1>} : vector<8x8xi32>
    %35 = arith.cmpi sgt, %34, %33 : vector<8x8xi32>
    %cst_10 = arith.constant -1.000000e+30 : f32
    %36 = vector.shape_cast %35 : vector<8x8xi1> to vector<1x8x8xi1>
    %37 = vector.broadcast %36 : vector<1x8x8xi1> to vector<8x8x8xi1>
    %38 = vector.broadcast %cst_10 : f32 to vector<8x8x8xf32>
    %39 = arith.select %37, %38, %32 : vector<8x8x8xi1>, vector<8x8x8xf32>
    %cst_11 = arith.constant dense<0xFF800000> : vector<8x8xf32>
    %40 = vector.multi_reduction <maximumf>, %39, %cst_11 [2] : vector<8x8x8xf32> to vector<8x8xf32>
    %41 = vector.shape_cast %40 : vector<8x8xf32> to vector<8x8x1xf32>
    %42 = vector.broadcast %41 : vector<8x8x1xf32> to vector<8x8x8xf32>
    %43 = arith.subf %39, %42 : vector<8x8x8xf32>
    %44 = math.exp %43 : vector<8x8x8xf32>
    %cst_12 = arith.constant dense<0.000000e+00> : vector<8x8xf32>
    %45 = vector.multi_reduction <add>, %44, %cst_12 [2] : vector<8x8x8xf32> to vector<8x8xf32>
    %46 = vector.shape_cast %45 : vector<8x8xf32> to vector<8x8x1xf32>
    %47 = tpu.reciprocal %46 {approx = true} : vector<8x8x1xf32> -> vector<8x8x1xf32>
    %48 = vector.broadcast %47 : vector<8x8x1xf32> to vector<8x8x8xf32>
    %49 = arith.mulf %44, %48 : vector<8x8x8xf32>
    %50 = arith.truncf %49 : vector<8x8x8xf32> to vector<8x8x8xbf16>
    "tpu.trace_start"() <{level = 10 : i32, message = "bqk,bkd->bqd"}> : () -> ()
    %cst_13 = arith.constant dense<0.000000e+00> : vector<8x8x8xf32>
    %51 = tpu.matmul %50, %31, %cst_13 {dimension_numbers = #tpu.dot_dimension_numbers<[2], [1], [1], [2], [0, 0, 0, 1, 1, 2], [0], [0]>} : vector<8x8x8xbf16>, vector<8x8x8xbf16>, vector<8x8x8xf32> -> vector<8x8x8xf32>
    "tpu.trace_stop"() : () -> ()
    %52 = arith.truncf %51 : vector<8x8x8xf32> to vector<8x8x8xbf16>
    %53 = vector.shape_cast %52 : vector<8x8x8xbf16> to vector<2x4x8x8xbf16>
    %54 = tpu.transpose %53, [0, 2, 1, 3] : vector<2x4x8x8xbf16> -> vector<2x8x4x8xbf16>
    %55 = vector.shape_cast %54 : vector<2x8x4x8xbf16> to vector<16x32xbf16>
    %c0_14 = arith.constant 0 : index
    %c0_15 = arith.constant 0 : index
    %56 = vector.load %arg4[%c0_14, %c0_15] : memref<32x32xbf16, #tpu.memory_space<vmem>>, vector<32x32xbf16>
    %cst_16 = arith.constant dense<0.000000e+00> : vector<16x32xf32>
    %57 = tpu.matmul %55, %56, %cst_16 {dimension_numbers = #tpu.dot_dimension_numbers<[1], [0], [0], [1], [0, 0, 1, 1], [], []>} : vector<16x32xbf16>, vector<32x32xbf16>, vector<16x32xf32> -> vector<16x32xf32>
    %58 = vector.broadcast %3 : vector<1x32xf32> to vector<16x32xf32>
    %59 = arith.addf %57, %58 : vector<16x32xf32>
    %60 = arith.addf %59, %1 : vector<16x32xf32>
    %cst_17 = arith.constant dense<0.000000e+00> : vector<16xf32>
    %61 = vector.multi_reduction <add>, %60, %cst_17 [1] : vector<16x32xf32> to vector<16xf32>
    %62 = vector.shape_cast %61 : vector<16xf32> to vector<16x1xf32>
    %cst_18 = arith.constant 3.200000e+01 : f32
    %63 = vector.broadcast %cst_18 : f32 to vector<16x1xf32>
    %64 = arith.divf %62, %63 : vector<16x1xf32>
    %65 = vector.broadcast %64 : vector<16x1xf32> to vector<16x32xf32>
    %66 = arith.subf %60, %65 : vector<16x32xf32>
    %67 = arith.mulf %66, %66 : vector<16x32xf32>
    %cst_19 = arith.constant dense<0.000000e+00> : vector<16xf32>
    %68 = vector.multi_reduction <add>, %67, %cst_19 [1] : vector<16x32xf32> to vector<16xf32>
    %69 = vector.shape_cast %68 : vector<16xf32> to vector<16x1xf32>
    %cst_20 = arith.constant 3.200000e+01 : f32
    %70 = vector.broadcast %cst_20 : f32 to vector<16x1xf32>
    %71 = arith.divf %69, %70 : vector<16x1xf32>
    %72 = vector.broadcast %64 : vector<16x1xf32> to vector<16x32xf32>
    %73 = arith.subf %60, %72 : vector<16x32xf32>
    %cst_21 = arith.constant 9.99999974E-6 : f32
    %74 = vector.broadcast %cst_21 : f32 to vector<16x1xf32>
    %75 = arith.addf %71, %74 : vector<16x1xf32>
    %76 = math.rsqrt %75 : vector<16x1xf32>
    %77 = vector.broadcast %76 : vector<16x1xf32> to vector<16x32xf32>
    %78 = arith.mulf %73, %77 : vector<16x32xf32>
    %79 = vector.broadcast %4 : vector<1x32xf32> to vector<16x32xf32>
    %80 = arith.mulf %78, %79 : vector<16x32xf32>
    %81 = vector.broadcast %5 : vector<1x32xf32> to vector<16x32xf32>
    %82 = arith.addf %80, %81 : vector<16x32xf32>
    %83 = arith.truncf %82 : vector<16x32xf32> to vector<16x32xbf16>
    %c0_22 = arith.constant 0 : index
    %c0_23 = arith.constant 0 : index
    %84 = vector.load %arg5[%c0_22, %c0_23] : memref<32x128xbf16, #tpu.memory_space<vmem>>, vector<32x128xbf16>
    %cst_24 = arith.constant dense<0.000000e+00> : vector<16x128xf32>
    %85 = tpu.matmul %83, %84, %cst_24 {dimension_numbers = #tpu.dot_dimension_numbers<[1], [0], [0], [1], [0, 0, 1, 1], [], []>} : vector<16x32xbf16>, vector<32x128xbf16>, vector<16x128xf32> -> vector<16x128xf32>
    %c0_25 = arith.constant 0 : index
    %c0_26 = arith.constant 0 : index
    %86 = vector.load %arg6[%c0_25, %c0_26] : memref<1x128xf32, #tpu.memory_space<vmem>>, vector<1x128xf32>
    %87 = vector.broadcast %86 : vector<1x128xf32> to vector<16x128xf32>
    %88 = arith.addf %85, %87 : vector<16x128xf32>
    %cst_27 = arith.constant 1.702000e+00 : f32
    %89 = vector.broadcast %cst_27 : f32 to vector<16x128xf32>
    %90 = arith.mulf %89, %88 : vector<16x128xf32>
    %91 = arith.negf %90 : vector<16x128xf32>
    %92 = math.exp %91 : vector<16x128xf32>
    %cst_28 = arith.constant 1.000000e+00 : f32
    %93 = vector.broadcast %cst_28 : f32 to vector<16x128xf32>
    %94 = arith.addf %93, %92 : vector<16x128xf32>
    %95 = arith.divf %93, %94 : vector<16x128xf32>
    %96 = arith.mulf %88, %95 : vector<16x128xf32>
    %97 = arith.truncf %96 : vector<16x128xf32> to vector<16x128xbf16>
    %c0_29 = arith.constant 0 : index
    %c0_30 = arith.constant 0 : index
    %98 = vector.load %arg7[%c0_29, %c0_30] : memref<128x32xbf16, #tpu.memory_space<vmem>>, vector<128x32xbf16>
    %cst_31 = arith.constant dense<0.000000e+00> : vector<16x32xf32>
    %99 = tpu.matmul %97, %98, %cst_31 {dimension_numbers = #tpu.dot_dimension_numbers<[1], [0], [0], [1], [0, 0, 1, 1], [], []>} : vector<16x128xbf16>, vector<128x32xbf16>, vector<16x32xf32> -> vector<16x32xf32>
    %100 = vector.broadcast %6 : vector<1x32xf32> to vector<16x32xf32>
    %101 = arith.addf %99, %100 : vector<16x32xf32>
    %102 = arith.addf %101, %82 : vector<16x32xf32>
    %cst_32 = arith.constant dense<0.000000e+00> : vector<16xf32>
    %103 = vector.multi_reduction <add>, %102, %cst_32 [1] : vector<16x32xf32> to vector<16xf32>
    %104 = vector.shape_cast %103 : vector<16xf32> to vector<16x1xf32>
    %cst_33 = arith.constant 3.200000e+01 : f32
    %105 = vector.broadcast %cst_33 : f32 to vector<16x1xf32>
    %106 = arith.divf %104, %105 : vector<16x1xf32>
    %107 = vector.broadcast %106 : vector<16x1xf32> to vector<16x32xf32>
    %108 = arith.subf %102, %107 : vector<16x32xf32>
    %109 = arith.mulf %108, %108 : vector<16x32xf32>
    %cst_34 = arith.constant dense<0.000000e+00> : vector<16xf32>
    %110 = vector.multi_reduction <add>, %109, %cst_34 [1] : vector<16x32xf32> to vector<16xf32>
    %111 = vector.shape_cast %110 : vector<16xf32> to vector<16x1xf32>
    %cst_35 = arith.constant 3.200000e+01 : f32
    %112 = vector.broadcast %cst_35 : f32 to vector<16x1xf32>
    %113 = arith.divf %111, %112 : vector<16x1xf32>
    %114 = vector.broadcast %106 : vector<16x1xf32> to vector<16x32xf32>
    %115 = arith.subf %102, %114 : vector<16x32xf32>
    %cst_36 = arith.constant 9.99999974E-6 : f32
    %116 = vector.broadcast %cst_36 : f32 to vector<16x1xf32>
    %117 = arith.addf %113, %116 : vector<16x1xf32>
    %118 = math.rsqrt %117 : vector<16x1xf32>
    %119 = vector.broadcast %118 : vector<16x1xf32> to vector<16x32xf32>
    %120 = arith.mulf %115, %119 : vector<16x32xf32>
    %121 = vector.broadcast %7 : vector<1x32xf32> to vector<16x32xf32>
    %122 = arith.mulf %120, %121 : vector<16x32xf32>
    %123 = vector.broadcast %8 : vector<1x32xf32> to vector<16x32xf32>
    %124 = arith.addf %122, %123 : vector<16x32xf32>
    %125 = vector.shape_cast %124 : vector<16x32xf32> to vector<2x8x32xf32>
    %c0_37 = arith.constant 0 : index
    %c0_38 = arith.constant 0 : index
    %c0_39 = arith.constant 0 : index
    %126 = vector.load %arg9[%c0_37, %c0_38, %c0_39] : memref<2x8x32xf32, #tpu.memory_space<vmem>>, vector<2x8x32xf32>
    tpu.vector_store %arg9[%c0_37, %c0_38, %c0_39], %125 {strides = array<i32>} : memref<2x8x32xf32, #tpu.memory_space<vmem>>, vector<2x8x32xf32>,
    return
  }
  func.func @transform_0(%arg0: i32) -> (i32, i32, i32) {
    %c0_i32 = arith.constant 0 : i32
    %c0_i32_0 = arith.constant 0 : i32
    %c0_i32_1 = arith.constant 0 : i32
    return %arg0, %c0_i32, %c0_i32_0 : i32, i32, i32
  }
  func.func @transform_1(%arg0: i32) -> (i32, i32) {
    %c0_i32 = arith.constant 0 : i32
    %c0_i32_0 = arith.constant 0 : i32
    %c0_i32_1 = arith.constant 0 : i32
    return %c0_i32, %c0_i32_0 : i32, i32
  }
  func.func @transform_2(%arg0: i32) -> (i32, i32) {
    %c0_i32 = arith.constant 0 : i32
    %c0_i32_0 = arith.constant 0 : i32
    %c0_i32_1 = arith.constant 0 : i32
    return %c0_i32, %c0_i32_0 : i32, i32
  }
  func.func @transform_3(%arg0: i32) -> (i32, i32) {
    %c0_i32 = arith.constant 0 : i32
    %c0_i32_0 = arith.constant 0 : i32
    %c0_i32_1 = arith.constant 0 : i32
    return %c0_i32, %c0_i32_0 : i32, i32
  }
  func.func @transform_4(%arg0: i32) -> (i32, i32) {
    %c0_i32 = arith.constant 0 : i32
    %c0_i32_0 = arith.constant 0 : i32
    %c0_i32_1 = arith.constant 0 : i32
    return %c0_i32, %c0_i32_0 : i32, i32
  }
  func.func @transform_5(%arg0: i32) -> (i32, i32) {
    %c0_i32 = arith.constant 0 : i32
    %c0_i32_0 = arith.constant 0 : i32
    %c0_i32_1 = arith.constant 0 : i32
    return %c0_i32, %c0_i32_0 : i32, i32
  }
  func.func @transform_6(%arg0: i32) -> (i32, i32) {
    %c0_i32 = arith.constant 0 : i32
    %c0_i32_0 = arith.constant 0 : i32
    %c0_i32_1 = arith.constant 0 : i32
    return %c0_i32, %c0_i32_0 : i32, i32
  }
  func.func @transform_7(%arg0: i32) -> (i32, i32) {
    %c0_i32 = arith.constant 0 : i32
    %c0_i32_0 = arith.constant 0 : i32
    %c0_i32_1 = arith.constant 0 : i32
    return %c0_i32, %c0_i32_0 : i32, i32
  }
  func.func @transform_8(%arg0: i32) -> (i32, i32, i32) {
    %c0_i32 = arith.constant 0 : i32
    %c0_i32_0 = arith.constant 0 : i32
    %c0_i32_1 = arith.constant 0 : i32
    return %arg0, %c0_i32, %c0_i32_0 : i32, i32, i32
  }
}

</mosaic_0001>

<llo_original>
// kernel: tpu_custom_call.1
$region0: #{tpu_custom_call.1}
  #allocation0 [shape = 'u32[]', space=smem, size = 0x4, offset = 0x4, fixed_abs, tag = 'smem constant byte address 0x4 - core index']
  #allocation1 [shape = 'u32[72,128]{1,0:T(1,128)}', space=vmem, size = 0x9000, scoped, tag = 'internal scratch']
  %s0 = inlined_call_operand.vmem [shape: f32[2,8,32], index: 0, kind: input, shape index: {}]
  %s1 = inlined_call_operand.vmem [shape: bf16[32,96], index: 1, kind: input, shape index: {}]
  %s2 = inlined_call_operand.vmem [shape: f32[1,96], index: 2, kind: input, shape index: {}]
  %s3 = inlined_call_operand.vmem [shape: bf16[32,32], index: 3, kind: input, shape index: {}]
  %s4 = inlined_call_operand.vmem [shape: bf16[32,128], index: 4, kind: input, shape index: {}]
  %s5 = inlined_call_operand.vmem [shape: f32[1,128], index: 5, kind: input, shape index: {}]
  %s6 = inlined_call_operand.vmem [shape: bf16[128,32], index: 6, kind: input, shape index: {}]
  %s7 = inlined_call_operand.vmem [shape: f32[6,32], index: 7, kind: input, shape index: {}]
  %s8 = inlined_call_operand.hbm [shape: f32[2,8,32], index: 8, kind: output, shape index: {}]
  %s9 = sld [smem:[#allocation0]]
  $region42: #{tpu_custom_call.1} parent=0
    _
  %s11 = ssub.s32 1, %s9
  %s12 = scalar_select 0, %s11, %s9
  $region1: #{tpu_custom_call.1} parent=0
    #allocation2 [shape = 'u8[8192]{0}', space=vmem, size = 0x2000, scoped, tag = 'output window, operand 0, single buffered']
    #allocation3 [shape = 's32[1]{0}', space=sflag, size = 0x4, scoped, tag = 'scoped memory for tpu_custom_call.1']
    %13 = vsyncpa [#allocation3], 0
    // Predicated region
    $region2: #{tpu_custom_call.1} parent=1 // pred_check
      _
    $region3: #{tpu_custom_call.1} parent=1 // pred_check_branch
      %15 = sbr.rel (0) target = $region5
    $region4: #{tpu_custom_call.1} parent=1 // pred_region
      _
    $region5: #{tpu_custom_call.1} parent=1 // pred_fallthru
      _
    // Predicated region
    $region6: #{tpu_custom_call.1} parent=1 // pred_check
      _
    $region7: #{tpu_custom_call.1} parent=1 // pred_check_branch
      %17 = sbr.rel (0) target = $region9
    $region8: #{tpu_custom_call.1} parent=1 // pred_region
      _
    $region9: #{tpu_custom_call.1} parent=1 // pred_fallthru
      _
    // Predicated region
    $region10: #{tpu_custom_call.1} parent=1 // pred_check
      _
    $region11: #{tpu_custom_call.1} parent=1 // pred_check_branch
      %19 = sbr.rel (0) target = $region13
    $region12: #{tpu_custom_call.1} parent=1 // pred_region
      _
    $region13: #{tpu_custom_call.1} parent=1 // pred_fallthru
      _
    // Predicated region
    $region14: #{tpu_custom_call.1} parent=1 // pred_check
      _
    $region15: #{tpu_custom_call.1} parent=1 // pred_check_branch
      %21 = sbr.rel (0) target = $region17
    $region16: #{tpu_custom_call.1} parent=1 // pred_region
      _
    $region17: #{tpu_custom_call.1} parent=1 // pred_fallthru
      _
    // Predicated region
    $region18: #{tpu_custom_call.1} parent=1 // pred_check
      _
    $region19: #{tpu_custom_call.1} parent=1 // pred_check_branch
      %23 = sbr.rel (0) target = $region21
    $region20: #{tpu_custom_call.1} parent=1 // pred_region
      _
    $region21: #{tpu_custom_call.1} parent=1 // pred_fallthru
      _
    // Predicated region
    $region22: #{tpu_custom_call.1} parent=1 // pred_check
      _
    $region23: #{tpu_custom_call.1} parent=1 // pred_check_branch
      %25 = sbr.rel (0) target = $region25
    $region24: #{tpu_custom_call.1} parent=1 // pred_region
      _
    $region25: #{tpu_custom_call.1} parent=1 // pred_fallthru
      _
    // Predicated region
    $region26: #{tpu_custom_call.1} parent=1 // pred_check
      _
    $region27: #{tpu_custom_call.1} parent=1 // pred_check_branch
      %27 = sbr.rel (0) target = $region29
    $region28: #{tpu_custom_call.1} parent=1 // pred_region
      _
    $region29: #{tpu_custom_call.1} parent=1 // pred_fallthru
      _
    // Predicated region
    $region30: #{tpu_custom_call.1} parent=1 // pred_check
      _
    $region31: #{tpu_custom_call.1} parent=1 // pred_check_branch
      %29 = sbr.rel (0) target = $region33
    $region32: #{tpu_custom_call.1} parent=1 // pred_region
      _
    $region33: #{tpu_custom_call.1} parent=1 // pred_fallthru
      _
    %v31 = vld [vmem:[%s0] sm:$0xff]
    %v32 = vld [vmem:[%s0 + $0x8] sm:$0xff]
    %v33 = vld [vmem:[%s7] sm:$0x3f]
    %v34 = vpack.c.bf16 %v32, %v31
    %v35 = vld [vmem:[%s1] sm:$0xf]
    %v36 = vld [vmem:[%s1 + $0x4] sm:$0xf]
    %v37 = vld [vmem:[%s1 + $0x8] sm:$0xf]
    %v38 = vld [vmem:[%s1 + $0xc] sm:$0xf]
    %v39 = vld [vmem:[%s2] sm:$0x1]
    %v41 = vperm.slane %v39, 0
    %v47 = vunpack.c.l.b16 %v35
    %v48 = vunpack.c.l.b16 %v36
    %v49 = vunpack.c.l.b16 %v37
    %v50 = vunpack.c.l.b16 %v38
    %v51 = vpack.c.b16 %v48, %v47
    %v52 = vpack.c.b16 %v50, %v49
    %vm55 = vcmask 261120
    %v57 = vsel %vm55, %v34, 0
    %59 = vmatpush.bf16.msra.mxu0 0
    %60 = vmatpush.bf16.msra.mxu0 0
    %61 = vmatpush.bf16.msra.mxu0 0
    %62 = vmatpush.bf16.msra.mxu0 0
    %63 = vmatpush.bf16.msra.mxu0 0
    %64 = vmatpush.bf16.msra.mxu0 0
    %65 = vmatpush.bf16.msra.mxu0 %v52
    %66 = vmatpush.bf16.msra.mxu0 %v51
    %67 = vmatmul.bf16.gmra.mxu0 %v57
    %v68 = vpop.f32.mrf.mxu0
    %v69 = vadd.f32 %v41, %v68
    %v70 = vpop.f32.mrf.mxu0
    %v71 = vadd.f32 %v41, %v70
    %72 = vdwg.mxu0
    %v73 = vmul.f32 %v69, 0.35355338
    %v74 = vmul.f32 %v71, 0.35355338
    %v75 = vpack.c.bf16 %v73, %v73
    %v76 = vpack.c.bf16 %v74, %v74
    %v77 = vpack.c.bf16 %v69, %v69
    %v78 = vpack.c.bf16 %v71, %v71
    %81 = vrot.lane.b32.xlu0 %v75, 120
    %v82 = vpop.permute.xlu0 %81
    %83 = vrot.lane.b32.xlu0 %v76, 120
    %v84 = vpop.permute.xlu0 %83
    %85 = vrot.lane.b32.xlu0 %v75, 112
    %v86 = vpop.permute.xlu0 %85
    %87 = vrot.lane.b32.xlu0 %v76, 112
    %v88 = vpop.permute.xlu0 %87
    %89 = vrot.lane.b32.xlu0 %v75, 104
    %v90 = vpop.permute.xlu0 %89
    %91 = vrot.lane.b32.xlu0 %v76, 104
    %v92 = vpop.permute.xlu0 %91
    %v95 = vpack.i.b16 %v82, %v75
    %v96 = vshrl.u32 %v75, 16
    %v97 = vshrl.u32 %v82, 16
    %v98 = vpack.i.b16 %v97, %v96
    %v101 = vpack.i.b16 %v90, %v86
    %v102 = vshrl.u32 %v86, 16
    %v103 = vshrl.u32 %v90, 16
    %v104 = vpack.i.b16 %v103, %v102
    %v107 = vpack.i.b16 %v84, %v76
    %v108 = vshrl.u32 %v76, 16
    %v109 = vshrl.u32 %v84, 16
    %v110 = vpack.i.b16 %v109, %v108
    %v113 = vpack.i.b16 %v92, %v88
    %v114 = vshrl.u32 %v88, 16
    %v115 = vshrl.u32 %v92, 16
    %v116 = vpack.i.b16 %v115, %v114
    %v119 = vunpack.c.l.s4 1983009808
    %v120 = vunpack.c.0.s8 %v119
    %v121 = vperm.slane %v95, %v120
    %v124 = vunpack.c.l.s4 1983009808
    %v125 = vunpack.c.0.s8 %v124
    %v126 = vperm.slane %v101, %v125
    %v127 = vrot.slane %v126, 4
    %vm128 = vcmask 1047556
    %v129 = vsel %vm128, %v127, %v121
    %v130 = vrot.slane %v121, 4
    %v131 = vsel %vm128, %v126, %v130
    %v133 = vunpack.c.l.s4 1934713408
    %v134 = vunpack.c.0.s8 %v133
    %v135 = vperm.slane %v129, %v134
    %v137 = vunpack.c.l.s4 1934713408
    %v138 = vunpack.c.0.s8 %v137
    %v139 = vperm.slane %v131, %v138
    %v140 = vrot.slane %v135, 4
    %v141 = vsel %vm128, 0, %v140
    %v142 = vrot.slane %v139, 4
    %v143 = vsel %vm128, 0, %v142
    %v146 = vunpack.c.l.s4 1983009808
    %v147 = vunpack.c.0.s8 %v146
    %v148 = vperm.slane %v98, %v147
    %v151 = vunpack.c.l.s4 1983009808
    %v152 = vunpack.c.0.s8 %v151
    %v153 = vperm.slane %v104, %v152
    %v154 = vrot.slane %v153, 4
    %v155 = vsel %vm128, %v154, %v148
    %v156 = vrot.slane %v148, 4
    %v157 = vsel %vm128, %v153, %v156
    %v159 = vunpack.c.l.s4 1934713408
    %v160 = vunpack.c.0.s8 %v159
    %v161 = vperm.slane %v155, %v160
    %v163 = vunpack.c.l.s4 1934713408
    %v164 = vunpack.c.0.s8 %v163
    %v165 = vperm.slane %v157, %v164
    %v166 = vrot.slane %v161, 4
    %v167 = vsel %vm128, 0, %v166
    %v168 = vrot.slane %v165, 4
    %v169 = vsel %vm128, 0, %v168
    %v172 = vunpack.c.l.s4 1983009808
    %v173 = vunpack.c.0.s8 %v172
    %v174 = vperm.slane %v107, %v173
    %v177 = vunpack.c.l.s4 1983009808
    %v178 = vunpack.c.0.s8 %v177
    %v179 = vperm.slane %v113, %v178
    %v180 = vrot.slane %v179, 4
    %v181 = vsel %vm128, %v180, %v174
    %v182 = vrot.slane %v174, 4
    %v183 = vsel %vm128, %v179, %v182
    %v185 = vunpack.c.l.s4 1934713408
    %v186 = vunpack.c.0.s8 %v185
    %v187 = vperm.slane %v181, %v186
    %v189 = vunpack.c.l.s4 1934713408
    %v190 = vunpack.c.0.s8 %v189
    %v191 = vperm.slane %v183, %v190
    %v192 = vrot.slane %v187, 4
    %v193 = vsel %vm128, 0, %v192
    %v194 = vrot.slane %v191, 4
    %v195 = vsel %vm128, 0, %v194
    %v198 = vunpack.c.l.s4 1983009808
    %v199 = vunpack.c.0.s8 %v198
    %v200 = vperm.slane %v110, %v199
    %v203 = vunpack.c.l.s4 1983009808
    %v204 = vunpack.c.0.s8 %v203
    %v205 = vperm.slane %v116, %v204
    %v206 = vrot.slane %v205, 4
    %v207 = vsel %vm128, %v206, %v200
    %v208 = vrot.slane %v200, 4
    %v209 = vsel %vm128, %v205, %v208
    %v211 = vunpack.c.l.s4 1934713408
    %v212 = vunpack.c.0.s8 %v211
    %v213 = vperm.slane %v207, %v212
    %v215 = vunpack.c.l.s4 1934713408
    %v216 = vunpack.c.0.s8 %v215
    %v217 = vperm.slane %v209, %v216
    %v218 = vrot.slane %v213, 4
    %v219 = vsel %vm128, 0, %v218
    %v220 = vrot.slane %v217, 4
    %v221 = vsel %vm128, 0, %v220
    %v222 = vsel %vm128, %v142, %v135
    %v224 = vunpack.c.l.s4 1983009808
    %v225 = vunpack.c.0.s8 %v224
    %v226 = vperm.slane %v222, %v225
    %v227 = vrot.slane %v143, 4
    %v228 = vsel %vm128, %v227, %v141
    %v230 = vunpack.c.l.s4 1983009808
    %v231 = vunpack.c.0.s8 %v230
    %v232 = vperm.slane %v228, %v231
    %v233 = vrot.slane %v232, 4
    %v234 = vsel %vm128, %v233, %v226
    %v236 = vunpack.c.l.s4 1934713408
    %v237 = vunpack.c.0.s8 %v236
    %v238 = vperm.slane %v234, %v237
    %v239 = vrot.slane %v238, 4
    %v240 = vsel %vm128, 0, %v239
    %v241 = vsel %vm128, %v168, %v161
    %v243 = vunpack.c.l.s4 1983009808
    %v244 = vunpack.c.0.s8 %v243
    %v245 = vperm.slane %v241, %v244
    %v246 = vrot.slane %v169, 4
    %v247 = vsel %vm128, %v246, %v167
    %v249 = vunpack.c.l.s4 1983009808
    %v250 = vunpack.c.0.s8 %v249
    %v251 = vperm.slane %v247, %v250
    %v252 = vrot.slane %v251, 4
    %v253 = vsel %vm128, %v252, %v245
    %v255 = vunpack.c.l.s4 1934713408
    %v256 = vunpack.c.0.s8 %v255
    %v257 = vperm.slane %v253, %v256
    %v258 = vrot.slane %v257, 4
    %v259 = vsel %vm128, 0, %v258
    %v260 = vsel %vm128, %v194, %v187
    %v262 = vunpack.c.l.s4 1983009808
    %v263 = vunpack.c.0.s8 %v262
    %v264 = vperm.slane %v260, %v263
    %v265 = vrot.slane %v195, 4
    %v266 = vsel %vm128, %v265, %v193
    %v268 = vunpack.c.l.s4 1983009808
    %v269 = vunpack.c.0.s8 %v268
    %v270 = vperm.slane %v266, %v269
    %v271 = vrot.slane %v270, 4
    %v272 = vsel %vm128, %v271, %v264
    %v274 = vunpack.c.l.s4 1934713408
    %v275 = vunpack.c.0.s8 %v274
    %v276 = vperm.slane %v272, %v275
    %v277 = vrot.slane %v276, 4
    %v278 = vsel %vm128, 0, %v277
    %v279 = vsel %vm128, %v220, %v213
    %v281 = vunpack.c.l.s4 1983009808
    %v282 = vunpack.c.0.s8 %v281
    %v283 = vperm.slane %v279, %v282
    %v284 = vrot.slane %v221, 4
    %v285 = vsel %vm128, %v284, %v219
    %v287 = vunpack.c.l.s4 1983009808
    %v288 = vunpack.c.0.s8 %v287
    %v289 = vperm.slane %v285, %v288
    %v290 = vrot.slane %v289, 4
    %v291 = vsel %vm128, %v290, %v283
    %v293 = vunpack.c.l.s4 1934713408
    %v294 = vunpack.c.0.s8 %v293
    %v295 = vperm.slane %v291, %v294
    %v296 = vrot.slane %v295, 4
    %v297 = vsel %vm128, 0, %v296
    %v300 = vpack.i.b16 %v257, %v238
    %v301 = vshrl.u32 %v238, 16
    %v302 = vshrl.u32 %v257, 16
    %v303 = vpack.i.b16 %v302, %v301
    %v306 = vpack.i.b16 %v259, %v240
    %v307 = vshrl.u32 %v240, 16
    %v308 = vshrl.u32 %v259, 16
    %v309 = vpack.i.b16 %v308, %v307
    %v312 = vpack.i.b16 %v295, %v276
    %v313 = vshrl.u32 %v276, 16
    %v314 = vshrl.u32 %v295, 16
    %v315 = vpack.i.b16 %v314, %v313
    %v318 = vpack.i.b16 %v297, %v278
    %v319 = vshrl.u32 %v278, 16
    %v320 = vshrl.u32 %v297, 16
    %v321 = vpack.i.b16 %v320, %v319
    %324 = vrot.lane.b32.xlu0 %v77, 120
    %v325 = vpop.permute.xlu0 %324
    %326 = vrot.lane.b32.xlu0 %v78, 120
    %v327 = vpop.permute.xlu0 %326
    %328 = vrot.lane.b32.xlu0 %v77, 112
    %v329 = vpop.permute.xlu0 %328
    %330 = vrot.lane.b32.xlu0 %v78, 112
    %v331 = vpop.permute.xlu0 %330
    %332 = vrot.lane.b32.xlu0 %v77, 104
    %v333 = vpop.permute.xlu0 %332
    %334 = vrot.lane.b32.xlu0 %v78, 104
    %v335 = vpop.permute.xlu0 %334
    %336 = vrot.lane.b32.xlu0 %v77, 96
    %v337 = vpop.permute.xlu0 %336
    %338 = vrot.lane.b32.xlu0 %v78, 96
    %v339 = vpop.permute.xlu0 %338
    %340 = vrot.lane.b32.xlu0 %v325, 96
    %v341 = vpop.permute.xlu0 %340
    %342 = vrot.lane.b32.xlu0 %v327, 96
    %v343 = vpop.permute.xlu0 %342
    %344 = vrot.lane.b32.xlu0 %v329, 96
    %v345 = vpop.permute.xlu0 %344
    %346 = vrot.lane.b32.xlu0 %v331, 96
    %v347 = vpop.permute.xlu0 %346
    %348 = vrot.lane.b32.xlu0 %v333, 96
    %v349 = vpop.permute.xlu0 %348
    %350 = vrot.lane.b32.xlu0 %v335, 96
    %v351 = vpop.permute.xlu0 %350
    %v354 = vpack.i.b16 %v341, %v337
    %v355 = vshrl.u32 %v337, 16
    %v356 = vshrl.u32 %v341, 16
    %v357 = vpack.i.b16 %v356, %v355
    %v360 = vpack.i.b16 %v349, %v345
    %v361 = vshrl.u32 %v345, 16
    %v362 = vshrl.u32 %v349, 16
    %v363 = vpack.i.b16 %v362, %v361
    %v366 = vpack.i.b16 %v343, %v339
    %v367 = vshrl.u32 %v339, 16
    %v368 = vshrl.u32 %v343, 16
    %v369 = vpack.i.b16 %v368, %v367
    %v372 = vpack.i.b16 %v351, %v347
    %v373 = vshrl.u32 %v347, 16
    %v374 = vshrl.u32 %v351, 16
    %v375 = vpack.i.b16 %v374, %v373
    %v378 = vunpack.c.l.s4 1983009808
    %v379 = vunpack.c.0.s8 %v378
    %v380 = vperm.slane %v354, %v379
    %v383 = vunpack.c.l.s4 1983009808
    %v384 = vunpack.c.0.s8 %v383
    %v385 = vperm.slane %v360, %v384
    %v386 = vrot.slane %v385, 4
    %v387 = vsel %vm128, %v386, %v380
    %v388 = vrot.slane %v380, 4
    %v389 = vsel %vm128, %v385, %v388
    %v391 = vunpack.c.l.s4 1934713408
    %v392 = vunpack.c.0.s8 %v391
    %v393 = vperm.slane %v387, %v392
    %v395 = vunpack.c.l.s4 1934713408
    %v396 = vunpack.c.0.s8 %v395
    %v397 = vperm.slane %v389, %v396
    %v398 = vrot.slane %v393, 4
    %v399 = vsel %vm128, 0, %v398
    %v400 = vrot.slane %v397, 4
    %v401 = vsel %vm128, 0, %v400
    %v404 = vunpack.c.l.s4 1983009808
    %v405 = vunpack.c.0.s8 %v404
    %v406 = vperm.slane %v357, %v405
    %v409 = vunpack.c.l.s4 1983009808
    %v410 = vunpack.c.0.s8 %v409
    %v411 = vperm.slane %v363, %v410
    %v412 = vrot.slane %v411, 4
    %v413 = vsel %vm128, %v412, %v406
    %v414 = vrot.slane %v406, 4
    %v415 = vsel %vm128, %v411, %v414
    %v417 = vunpack.c.l.s4 1934713408
    %v418 = vunpack.c.0.s8 %v417
    %v419 = vperm.slane %v413, %v418
    %v421 = vunpack.c.l.s4 1934713408
    %v422 = vunpack.c.0.s8 %v421
    %v423 = vperm.slane %v415, %v422
    %v424 = vrot.slane %v419, 4
    %v425 = vsel %vm128, 0, %v424
    %v426 = vrot.slane %v423, 4
    %v427 = vsel %vm128, 0, %v426
    %v430 = vunpack.c.l.s4 1983009808
    %v431 = vunpack.c.0.s8 %v430
    %v432 = vperm.slane %v366, %v431
    %v435 = vunpack.c.l.s4 1983009808
    %v436 = vunpack.c.0.s8 %v435
    %v437 = vperm.slane %v372, %v436
    %v438 = vrot.slane %v437, 4
    %v439 = vsel %vm128, %v438, %v432
    %v440 = vrot.slane %v432, 4
    %v441 = vsel %vm128, %v437, %v440
    %v443 = vunpack.c.l.s4 1934713408
    %v444 = vunpack.c.0.s8 %v443
    %v445 = vperm.slane %v439, %v444
    %v447 = vunpack.c.l.s4 1934713408
    %v448 = vunpack.c.0.s8 %v447
    %v449 = vperm.slane %v441, %v448
    %v450 = vrot.slane %v445, 4
    %v451 = vsel %vm128, 0, %v450
    %v452 = vrot.slane %v449, 4
    %v453 = vsel %vm128, 0, %v452
    %v456 = vunpack.c.l.s4 1983009808
    %v457 = vunpack.c.0.s8 %v456
    %v458 = vperm.slane %v369, %v457
    %v461 = vunpack.c.l.s4 1983009808
    %v462 = vunpack.c.0.s8 %v461
    %v463 = vperm.slane %v375, %v462
    %v464 = vrot.slane %v463, 4
    %v465 = vsel %vm128, %v464, %v458
    %v466 = vrot.slane %v458, 4
    %v467 = vsel %vm128, %v463, %v466
    %v469 = vunpack.c.l.s4 1934713408
    %v470 = vunpack.c.0.s8 %v469
    %v471 = vperm.slane %v465, %v470
    %v473 = vunpack.c.l.s4 1934713408
    %v474 = vunpack.c.0.s8 %v473
    %v475 = vperm.slane %v467, %v474
    %v476 = vrot.slane %v471, 4
    %v477 = vsel %vm128, 0, %v476
    %v478 = vrot.slane %v475, 4
    %v479 = vsel %vm128, 0, %v478
    %v480 = vsel %vm128, %v400, %v393
    %v482 = vunpack.c.l.s4 1983009808
    %v483 = vunpack.c.0.s8 %v482
    %v484 = vperm.slane %v480, %v483
    %v485 = vrot.slane %v401, 4
    %v486 = vsel %vm128, %v485, %v399
    %v488 = vunpack.c.l.s4 1983009808
    %v489 = vunpack.c.0.s8 %v488
    %v490 = vperm.slane %v486, %v489
    %v491 = vrot.slane %v490, 4
    %v492 = vsel %vm128, %v491, %v484
    %v494 = vunpack.c.l.s4 1934713408
    %v495 = vunpack.c.0.s8 %v494
    %v496 = vperm.slane %v492, %v495
    %v497 = vrot.slane %v496, 4
    %v498 = vsel %vm128, 0, %v497
    %v499 = vsel %vm128, %v426, %v419
    %v501 = vunpack.c.l.s4 1983009808
    %v502 = vunpack.c.0.s8 %v501
    %v503 = vperm.slane %v499, %v502
    %v504 = vrot.slane %v427, 4
    %v505 = vsel %vm128, %v504, %v425
    %v507 = vunpack.c.l.s4 1983009808
    %v508 = vunpack.c.0.s8 %v507
    %v509 = vperm.slane %v505, %v508
    %v510 = vrot.slane %v509, 4
    %v511 = vsel %vm128, %v510, %v503
    %v513 = vunpack.c.l.s4 1934713408
    %v514 = vunpack.c.0.s8 %v513
    %v515 = vperm.slane %v511, %v514
    %v516 = vrot.slane %v515, 4
    %v517 = vsel %vm128, 0, %v516
    %v518 = vsel %vm128, %v452, %v445
    %v520 = vunpack.c.l.s4 1983009808
    %v521 = vunpack.c.0.s8 %v520
    %v522 = vperm.slane %v518, %v521
    %v523 = vrot.slane %v453, 4
    %v524 = vsel %vm128, %v523, %v451
    %v526 = vunpack.c.l.s4 1983009808
    %v527 = vunpack.c.0.s8 %v526
    %v528 = vperm.slane %v524, %v527
    %v529 = vrot.slane %v528, 4
    %v530 = vsel %vm128, %v529, %v522
    %v532 = vunpack.c.l.s4 1934713408
    %v533 = vunpack.c.0.s8 %v532
    %v534 = vperm.slane %v530, %v533
    %v535 = vrot.slane %v534, 4
    %v536 = vsel %vm128, 0, %v535
    %v537 = vsel %vm128, %v478, %v471
    %v539 = vunpack.c.l.s4 1983009808
    %v540 = vunpack.c.0.s8 %v539
    %v541 = vperm.slane %v537, %v540
    %v542 = vrot.slane %v479, 4
    %v543 = vsel %vm128, %v542, %v477
    %v545 = vunpack.c.l.s4 1983009808
    %v546 = vunpack.c.0.s8 %v545
    %v547 = vperm.slane %v543, %v546
    %v548 = vrot.slane %v547, 4
    %v549 = vsel %vm128, %v548, %v541
    %v551 = vunpack.c.l.s4 1934713408
    %v552 = vunpack.c.0.s8 %v551
    %v553 = vperm.slane %v549, %v552
    %v554 = vrot.slane %v553, 4
    %v555 = vsel %vm128, 0, %v554
    %v558 = vpack.i.b16 %v515, %v496
    %v559 = vshrl.u32 %v496, 16
    %v560 = vshrl.u32 %v515, 16
    %v561 = vpack.i.b16 %v560, %v559
    %v564 = vpack.i.b16 %v517, %v498
    %v565 = vshrl.u32 %v498, 16
    %v566 = vshrl.u32 %v517, 16
    %v567 = vpack.i.b16 %v566, %v565
    %v570 = vpack.i.b16 %v553, %v534
    %v571 = vshrl.u32 %v534, 16
    %v572 = vshrl.u32 %v553, 16
    %v573 = vpack.i.b16 %v572, %v571
    %v576 = vpack.i.b16 %v555, %v536
    %v577 = vshrl.u32 %v536, 16
    %v578 = vshrl.u32 %v555, 16
    %v579 = vpack.i.b16 %v578, %v577
    %580 = vrot.lane.b32.xlu0 %v77, 64
    %v581 = vpop.permute.xlu0 %580
    %582 = vrot.lane.b32.xlu0 %v78, 64
    %v583 = vpop.permute.xlu0 %582
    %584 = vrot.lane.b32.xlu0 %v325, 64
    %v585 = vpop.permute.xlu0 %584
    %586 = vrot.lane.b32.xlu0 %v327, 64
    %v587 = vpop.permute.xlu0 %586
    %588 = vrot.lane.b32.xlu0 %v329, 64
    %v589 = vpop.permute.xlu0 %588
    %590 = vrot.lane.b32.xlu0 %v331, 64
    %v591 = vpop.permute.xlu0 %590
    %592 = vrot.lane.b32.xlu0 %v333, 64
    %v593 = vpop.permute.xlu0 %592
    %594 = vrot.lane.b32.xlu0 %v335, 64
    %v595 = vpop.permute.xlu0 %594
    %v598 = vpack.i.b16 %v585, %v581
    %v599 = vshrl.u32 %v581, 16
    %v600 = vshrl.u32 %v585, 16
    %v601 = vpack.i.b16 %v600, %v599
    %v604 = vpack.i.b16 %v593, %v589
    %v605 = vshrl.u32 %v589, 16
    %v606 = vshrl.u32 %v593, 16
    %v607 = vpack.i.b16 %v606, %v605
    %v610 = vpack.i.b16 %v587, %v583
    %v611 = vshrl.u32 %v583, 16
    %v612 = vshrl.u32 %v587, 16
    %v613 = vpack.i.b16 %v612, %v611
    %v616 = vpack.i.b16 %v595, %v591
    %v617 = vshrl.u32 %v591, 16
    %v618 = vshrl.u32 %v595, 16
    %v619 = vpack.i.b16 %v618, %v617
    %v622 = vunpack.c.l.s4 1983009808
    %v623 = vunpack.c.0.s8 %v622
    %v624 = vperm.slane %v598, %v623
    %v627 = vunpack.c.l.s4 1983009808
    %v628 = vunpack.c.0.s8 %v627
    %v629 = vperm.slane %v604, %v628
    %v630 = vrot.slane %v629, 4
    %v631 = vsel %vm128, %v630, %v624
    %v632 = vrot.slane %v624, 4
    %v633 = vsel %vm128, %v629, %v632
    %v635 = vunpack.c.l.s4 1934713408
    %v636 = vunpack.c.0.s8 %v635
    %v637 = vperm.slane %v631, %v636
    %v639 = vunpack.c.l.s4 1934713408
    %v640 = vunpack.c.0.s8 %v639
    %v641 = vperm.slane %v633, %v640
    %v642 = vrot.slane %v637, 4
    %v643 = vsel %vm128, 0, %v642
    %v644 = vrot.slane %v641, 4
    %v645 = vsel %vm128, 0, %v644
    %v648 = vunpack.c.l.s4 1983009808
    %v649 = vunpack.c.0.s8 %v648
    %v650 = vperm.slane %v601, %v649
    %v653 = vunpack.c.l.s4 1983009808
    %v654 = vunpack.c.0.s8 %v653
    %v655 = vperm.slane %v607, %v654
    %v656 = vrot.slane %v655, 4
    %v657 = vsel %vm128, %v656, %v650
    %v658 = vrot.slane %v650, 4
    %v659 = vsel %vm128, %v655, %v658
    %v661 = vunpack.c.l.s4 1934713408
    %v662 = vunpack.c.0.s8 %v661
    %v663 = vperm.slane %v657, %v662
    %v665 = vunpack.c.l.s4 1934713408
    %v666 = vunpack.c.0.s8 %v665
    %v667 = vperm.slane %v659, %v666
    %v668 = vrot.slane %v663, 4
    %v669 = vsel %vm128, 0, %v668
    %v670 = vrot.slane %v667, 4
    %v671 = vsel %vm128, 0, %v670
    %v674 = vunpack.c.l.s4 1983009808
    %v675 = vunpack.c.0.s8 %v674
    %v676 = vperm.slane %v610, %v675
    %v679 = vunpack.c.l.s4 1983009808
    %v680 = vunpack.c.0.s8 %v679
    %v681 = vperm.slane %v616, %v680
    %v682 = vrot.slane %v681, 4
    %v683 = vsel %vm128, %v682, %v676
    %v684 = vrot.slane %v676, 4
    %v685 = vsel %vm128, %v681, %v684
    %v687 = vunpack.c.l.s4 1934713408
    %v688 = vunpack.c.0.s8 %v687
    %v689 = vperm.slane %v683, %v688
    %v691 = vunpack.c.l.s4 1934713408
    %v692 = vunpack.c.0.s8 %v691
    %v693 = vperm.slane %v685, %v692
    %v694 = vrot.slane %v689, 4
    %v695 = vsel %vm128, 0, %v694
    %v696 = vrot.slane %v693, 4
    %v697 = vsel %vm128, 0, %v696
    %v700 = vunpack.c.l.s4 1983009808
    %v701 = vunpack.c.0.s8 %v700
    %v702 = vperm.slane %v613, %v701
    %v705 = vunpack.c.l.s4 1983009808
    %v706 = vunpack.c.0.s8 %v705
    %v707 = vperm.slane %v619, %v706
    %v708 = vrot.slane %v707, 4
    %v709 = vsel %vm128, %v708, %v702
    %v710 = vrot.slane %v702, 4
    %v711 = vsel %vm128, %v707, %v710
    %v713 = vunpack.c.l.s4 1934713408
    %v714 = vunpack.c.0.s8 %v713
    %v715 = vperm.slane %v709, %v714
    %v717 = vunpack.c.l.s4 1934713408
    %v718 = vunpack.c.0.s8 %v717
    %v719 = vperm.slane %v711, %v718
    %v720 = vrot.slane %v715, 4
    %v721 = vsel %vm128, 0, %v720
    %v722 = vrot.slane %v719, 4
    %v723 = vsel %vm128, 0, %v722
    %v724 = vsel %vm128, %v644, %v637
    %v726 = vunpack.c.l.s4 1983009808
    %v727 = vunpack.c.0.s8 %v726
    %v728 = vperm.slane %v724, %v727
    %v729 = vrot.slane %v645, 4
    %v730 = vsel %vm128, %v729, %v643
    %v732 = vunpack.c.l.s4 1983009808
    %v733 = vunpack.c.0.s8 %v732
    %v734 = vperm.slane %v730, %v733
    %v735 = vrot.slane %v734, 4
    %v736 = vsel %vm128, %v735, %v728
    %v738 = vunpack.c.l.s4 1934713408
    %v739 = vunpack.c.0.s8 %v738
    %v740 = vperm.slane %v736, %v739
    %v741 = vrot.slane %v740, 4
    %v742 = vsel %vm128, 0, %v741
    %v743 = vsel %vm128, %v670, %v663
    %v745 = vunpack.c.l.s4 1983009808
    %v746 = vunpack.c.0.s8 %v745
    %v747 = vperm.slane %v743, %v746
    %v748 = vrot.slane %v671, 4
    %v749 = vsel %vm128, %v748, %v669
    %v751 = vunpack.c.l.s4 1983009808
    %v752 = vunpack.c.0.s8 %v751
    %v753 = vperm.slane %v749, %v752
    %v754 = vrot.slane %v753, 4
    %v755 = vsel %vm128, %v754, %v747
    %v757 = vunpack.c.l.s4 1934713408
    %v758 = vunpack.c.0.s8 %v757
    %v759 = vperm.slane %v755, %v758
    %v760 = vrot.slane %v759, 4
    %v761 = vsel %vm128, 0, %v760
    %v762 = vsel %vm128, %v696, %v689
    %v764 = vunpack.c.l.s4 1983009808
    %v765 = vunpack.c.0.s8 %v764
    %v766 = vperm.slane %v762, %v765
    %v767 = vrot.slane %v697, 4
    %v768 = vsel %vm128, %v767, %v695
    %v770 = vunpack.c.l.s4 1983009808
    %v771 = vunpack.c.0.s8 %v770
    %v772 = vperm.slane %v768, %v771
    %v773 = vrot.slane %v772, 4
    %v774 = vsel %vm128, %v773, %v766
    %v776 = vunpack.c.l.s4 1934713408
    %v777 = vunpack.c.0.s8 %v776
    %v778 = vperm.slane %v774, %v777
    %v779 = vrot.slane %v778, 4
    %v780 = vsel %vm128, 0, %v779
    %v781 = vsel %vm128, %v722, %v715
    %v783 = vunpack.c.l.s4 1983009808
    %v784 = vunpack.c.0.s8 %v783
    %v785 = vperm.slane %v781, %v784
    %v786 = vrot.slane %v723, 4
    %v787 = vsel %vm128, %v786, %v721
    %v789 = vunpack.c.l.s4 1983009808
    %v790 = vunpack.c.0.s8 %v789
    %v791 = vperm.slane %v787, %v790
    %v792 = vrot.slane %v791, 4
    %v793 = vsel %vm128, %v792, %v785
    %v795 = vunpack.c.l.s4 1934713408
    %v796 = vunpack.c.0.s8 %v795
    %v797 = vperm.slane %v793, %v796
    %v798 = vrot.slane %v797, 4
    %v799 = vsel %vm128, 0, %v798
    %v802 = vpack.i.b16 %v759, %v740
    %v803 = vshrl.u32 %v740, 16
    %v804 = vshrl.u32 %v759, 16
    %v805 = vpack.i.b16 %v804, %v803
    %v808 = vpack.i.b16 %v761, %v742
    %v809 = vshrl.u32 %v742, 16
    %v810 = vshrl.u32 %v761, 16
    %v811 = vpack.i.b16 %v810, %v809
    %v814 = vpack.i.b16 %v797, %v778
    %v815 = vshrl.u32 %v778, 16
    %v816 = vshrl.u32 %v797, 16
    %v817 = vpack.i.b16 %v816, %v815
    %v820 = vpack.i.b16 %v799, %v780
    %v821 = vshrl.u32 %v780, 16
    %v822 = vshrl.u32 %v799, 16
    %v823 = vpack.i.b16 %v822, %v821
    %vm824 = vcmask 64512
    %v826 = vsel %vm824, %v300, 0
    %v829 = vsel %vm824, %v558, 0
    %831 = vmatpush.bf16.xpose.msra.mxu0 0
    %832 = vmatpush.bf16.xpose.msra.mxu0 0
    %833 = vmatpush.bf16.xpose.msra.mxu0 0
    %834 = vmatpush.bf16.xpose.msra.mxu0 0
    %835 = vmatpush.bf16.xpose.msra.mxu0 0
    %836 = vmatpush.bf16.xpose.msra.mxu0 0
    %837 = vmatpush.bf16.xpose.msra.mxu0 0
    %838 = vmatpush.bf16.xpose.msra.mxu0 %v829
    %839 = vmatmul.bf16.gmra.mxu0 %v826
    %v840 = vpop.f32.mrf.mxu0
    %v841 = vadd.f32 0.0, %v840
    %v842 = vpop.f32.mrf.mxu0
    %843 = vdwg.mxu0
    %v845 = vsel %vm824, %v303, 0
    %v848 = vsel %vm824, %v561, 0
    %850 = vmatpush.bf16.xpose.msra.mxu0 0
    %851 = vmatpush.bf16.xpose.msra.mxu0 0
    %852 = vmatpush.bf16.xpose.msra.mxu0 0
    %853 = vmatpush.bf16.xpose.msra.mxu0 0
    %854 = vmatpush.bf16.xpose.msra.mxu0 0
    %855 = vmatpush.bf16.xpose.msra.mxu0 0
    %856 = vmatpush.bf16.xpose.msra.mxu0 0
    %857 = vmatpush.bf16.xpose.msra.mxu0 %v848
    %858 = vmatmul.bf16.gmra.mxu0 %v845
    %v859 = vpop.f32.mrf.mxu0
    %v860 = vadd.f32 0.0, %v859
    %v861 = vpop.f32.mrf.mxu0
    %862 = vdwg.mxu0
    %v864 = vsel %vm824, %v306, 0
    %v867 = vsel %vm824, %v564, 0
    %869 = vmatpush.bf16.xpose.msra.mxu0 0
    %870 = vmatpush.bf16.xpose.msra.mxu0 0
    %871 = vmatpush.bf16.xpose.msra.mxu0 0
    %872 = vmatpush.bf16.xpose.msra.mxu0 0
    %873 = vmatpush.bf16.xpose.msra.mxu0 0
    %874 = vmatpush.bf16.xpose.msra.mxu0 0
    %875 = vmatpush.bf16.xpose.msra.mxu0 0
    %876 = vmatpush.bf16.xpose.msra.mxu0 %v867
    %877 = vmatmul.bf16.gmra.mxu0 %v864
    %v878 = vpop.f32.mrf.mxu0
    %v879 = vadd.f32 0.0, %v878
    %v880 = vpop.f32.mrf.mxu0
    %881 = vdwg.mxu0
    %v883 = vsel %vm824, %v309, 0
    %v886 = vsel %vm824, %v567, 0
    %888 = vmatpush.bf16.xpose.msra.mxu0 0
    %889 = vmatpush.bf16.xpose.msra.mxu0 0
    %890 = vmatpush.bf16.xpose.msra.mxu0 0
    %891 = vmatpush.bf16.xpose.msra.mxu0 0
    %892 = vmatpush.bf16.xpose.msra.mxu0 0
    %893 = vmatpush.bf16.xpose.msra.mxu0 0
    %894 = vmatpush.bf16.xpose.msra.mxu0 0
    %895 = vmatpush.bf16.xpose.msra.mxu0 %v886
    %896 = vmatmul.bf16.gmra.mxu0 %v883
    %v897 = vpop.f32.mrf.mxu0
    %v898 = vadd.f32 0.0, %v897
    %v899 = vpop.f32.mrf.mxu0
    %900 = vdwg.mxu0
    %v902 = vsel %vm824, %v312, 0
    %v905 = vsel %vm824, %v570, 0
    %907 = vmatpush.bf16.xpose.msra.mxu0 0
    %908 = vmatpush.bf16.xpose.msra.mxu0 0
    %909 = vmatpush.bf16.xpose.msra.mxu0 0
    %910 = vmatpush.bf16.xpose.msra.mxu0 0
    %911 = vmatpush.bf16.xpose.msra.mxu0 0
    %912 = vmatpush.bf16.xpose.msra.mxu0 0
    %913 = vmatpush.bf16.xpose.msra.mxu0 0
    %914 = vmatpush.bf16.xpose.msra.mxu0 %v905
    %915 = vmatmul.bf16.gmra.mxu0 %v902
    %v916 = vpop.f32.mrf.mxu0
    %v917 = vadd.f32 0.0, %v916
    %v918 = vpop.f32.mrf.mxu0
    %919 = vdwg.mxu0
    %v921 = vsel %vm824, %v315, 0
    %v924 = vsel %vm824, %v573, 0
    %926 = vmatpush.bf16.xpose.msra.mxu0 0
    %927 = vmatpush.bf16.xpose.msra.mxu0 0
    %928 = vmatpush.bf16.xpose.msra.mxu0 0
    %929 = vmatpush.bf16.xpose.msra.mxu0 0
    %930 = vmatpush.bf16.xpose.msra.mxu0 0
    %931 = vmatpush.bf16.xpose.msra.mxu0 0
    %932 = vmatpush.bf16.xpose.msra.mxu0 0
    %933 = vmatpush.bf16.xpose.msra.mxu0 %v924
    %934 = vmatmul.bf16.gmra.mxu0 %v921
    %v935 = vpop.f32.mrf.mxu0
    %v936 = vadd.f32 0.0, %v935
    %v937 = vpop.f32.mrf.mxu0
    %938 = vdwg.mxu0
    %v940 = vsel %vm824, %v318, 0
    %v943 = vsel %vm824, %v576, 0
    %945 = vmatpush.bf16.xpose.msra.mxu0 0
    %946 = vmatpush.bf16.xpose.msra.mxu0 0
    %947 = vmatpush.bf16.xpose.msra.mxu0 0
    %948 = vmatpush.bf16.xpose.msra.mxu0 0
    %949 = vmatpush.bf16.xpose.msra.mxu0 0
    %950 = vmatpush.bf16.xpose.msra.mxu0 0
    %951 = vmatpush.bf16.xpose.msra.mxu0 0
    %952 = vmatpush.bf16.xpose.msra.mxu0 %v943
    %953 = vmatmul.bf16.gmra.mxu0 %v940
    %v954 = vpop.f32.mrf.mxu0
    %v955 = vadd.f32 0.0, %v954
    %v956 = vpop.f32.mrf.mxu0
    %957 = vdwg.mxu0
    %v959 = vsel %vm824, %v321, 0
    %v962 = vsel %vm824, %v579, 0
    %964 = vmatpush.bf16.xpose.msra.mxu0 0
    %965 = vmatpush.bf16.xpose.msra.mxu0 0
    %966 = vmatpush.bf16.xpose.msra.mxu0 0
    %967 = vmatpush.bf16.xpose.msra.mxu0 0
    %968 = vmatpush.bf16.xpose.msra.mxu0 0
    %969 = vmatpush.bf16.xpose.msra.mxu0 0
    %970 = vmatpush.bf16.xpose.msra.mxu0 0
    %971 = vmatpush.bf16.xpose.msra.mxu0 %v962
    %972 = vmatmul.bf16.gmra.mxu0 %v959
    %v973 = vpop.f32.mrf.mxu0
    %v974 = vadd.f32 0.0, %v973
    %v975 = vpop.f32.mrf.mxu0
    %976 = vdwg.mxu0
    %v977 = vlaneseq
    %v978 = vshrl.u32 %v977, 7
    %v979 = vlaneseq
    %v980 = vand.u32 %v979, 127
    %vm981 = vcmp.gt.s32.totalorder %v980, %v978
    %v982 = vsel %vm981, 1, 0
    %vm983 = vcmp.eq.s32.totalorder %v982, 1
    %v984 = vsel %vm983, -1e+30, %v841
    %v985 = vsel %vm983, -1e+30, %v860
    %v986 = vsel %vm983, -1e+30, %v879
    %v987 = vsel %vm983, -1e+30, %v898
    %v988 = vsel %vm983, -1e+30, %v917
    %v989 = vsel %vm983, -1e+30, %v936
    %v990 = vsel %vm983, -1e+30, %v955
    %v991 = vsel %vm983, -1e+30, %v974
    %v992 = vsel %vm824, %v984, -inf
    %993 = vmax.xlane.f32.xlu0 %v992
    %v994 = vpop.xlane.xlu0 %993
    %v995 = vsel %vm824, %v985, -inf
    %996 = vmax.xlane.f32.xlu0 %v995
    %v997 = vpop.xlane.xlu0 %996
    %v998 = vsel %vm824, %v986, -inf
    %999 = vmax.xlane.f32.xlu0 %v998
    %v1000 = vpop.xlane.xlu0 %999
    %v1001 = vsel %vm824, %v987, -inf
    %1002 = vmax.xlane.f32.xlu0 %v1001
    %v1003 = vpop.xlane.xlu0 %1002
    %v1004 = vsel %vm824, %v988, -inf
    %1005 = vmax.xlane.f32.xlu0 %v1004
    %v1006 = vpop.xlane.xlu0 %1005
    %v1007 = vsel %vm824, %v989, -inf
    %1008 = vmax.xlane.f32.xlu0 %v1007
    %v1009 = vpop.xlane.xlu0 %1008
    %v1010 = vsel %vm824, %v990, -inf
    %1011 = vmax.xlane.f32.xlu0 %v1010
    %v1012 = vpop.xlane.xlu0 %1011
    %v1013 = vsel %vm824, %v991, -inf
    %1014 = vmax.xlane.f32.xlu0 %v1013
    %v1015 = vpop.xlane.xlu0 %1014
    %v1016 = vsub.f32 %v984, %v994
    %v1017 = vsub.f32 %v985, %v997
    %v1018 = vsub.f32 %v986, %v1000
    %v1019 = vsub.f32 %v987, %v1003
    %v1020 = vsub.f32 %v988, %v1006
    %v1021 = vsub.f32 %v989, %v1009
    %v1022 = vsub.f32 %v990, %v1012
    %v1023 = vsub.f32 %v991, %v1015
    %v1024 = vmul.f32 %v1016, 1.442695
    %v1025 = vpow.pop %v1024
    %v1026 = vmul.f32 %v1017, 1.442695
    %v1027 = vpow.pop %v1026
    %v1028 = vmul.f32 %v1018, 1.442695
    %v1029 = vpow.pop %v1028
    %v1030 = vmul.f32 %v1019, 1.442695
    %v1031 = vpow.pop %v1030
    %v1032 = vmul.f32 %v1020, 1.442695
    %v1033 = vpow.pop %v1032
    %v1034 = vmul.f32 %v1021, 1.442695
    %v1035 = vpow.pop %v1034
    %v1036 = vmul.f32 %v1022, 1.442695
    %v1037 = vpow.pop %v1036
    %v1038 = vmul.f32 %v1023, 1.442695
    %v1039 = vpow.pop %v1038
    %v1040 = vsel %vm824, %v1025, 0.0
    %1041 = vadd.xlane.f32.xlu0 %v1040
    %v1042 = vpop.xlane.xlu0 %1041
    %v1043 = vsel %vm824, %v1027, 0.0
    %1044 = vadd.xlane.f32.xlu0 %v1043
    %v1045 = vpop.xlane.xlu0 %1044
    %v1046 = vsel %vm824, %v1029, 0.0
    %1047 = vadd.xlane.f32.xlu0 %v1046
    %v1048 = vpop.xlane.xlu0 %1047
    %v1049 = vsel %vm824, %v1031, 0.0
    %1050 = vadd.xlane.f32.xlu0 %v1049
    %v1051 = vpop.xlane.xlu0 %1050
    %v1052 = vsel %vm824, %v1033, 0.0
    %1053 = vadd.xlane.f32.xlu0 %v1052
    %v1054 = vpop.xlane.xlu0 %1053
    %v1055 = vsel %vm824, %v1035, 0.0
    %1056 = vadd.xlane.f32.xlu0 %v1055
    %v1057 = vpop.xlane.xlu0 %1056
    %v1058 = vsel %vm824, %v1037, 0.0
    %1059 = vadd.xlane.f32.xlu0 %v1058
    %v1060 = vpop.xlane.xlu0 %1059
    %v1061 = vsel %vm824, %v1039, 0.0
    %1062 = vadd.xlane.f32.xlu0 %v1061
    %v1063 = vpop.xlane.xlu0 %1062
    %v1064 = vrcp.pop %v1042
    %v1065 = vrcp.pop %v1045
    %v1066 = vrcp.pop %v1048
    %v1067 = vrcp.pop %v1051
    %v1068 = vrcp.pop %v1054
    %v1069 = vrcp.pop %v1057
    %v1070 = vrcp.pop %v1060
    %v1071 = vrcp.pop %v1063
    %v1072 = vmul.f32 %v1025, %v1064
    %v1073 = vmul.f32 %v1027, %v1065
    %v1074 = vmul.f32 %v1029, %v1066
    %v1075 = vmul.f32 %v1031, %v1067
    %v1076 = vmul.f32 %v1033, %v1068
    %v1077 = vmul.f32 %v1035, %v1069
    %v1078 = vmul.f32 %v1037, %v1070
    %v1079 = vmul.f32 %v1039, %v1071
    %v1080 = vpack.c.bf16 %v1072, %v1072
    %v1081 = vpack.c.bf16 %v1073, %v1073
    %v1082 = vpack.c.bf16 %v1074, %v1074
    %v1083 = vpack.c.bf16 %v1075, %v1075
    %v1084 = vpack.c.bf16 %v1076, %v1076
    %v1085 = vpack.c.bf16 %v1077, %v1077
    %v1086 = vpack.c.bf16 %v1078, %v1078
    %v1087 = vpack.c.bf16 %v1079, %v1079
    %v1089 = vsel %vm824, %v1080, 0
    %vm1091 = vcmask 1043456
    %v1093 = vsel %vm1091, %v802, 0
    %1095 = vmatpush.bf16.msra.mxu0 0
    %1096 = vmatpush.bf16.msra.mxu0 0
    %1097 = vmatpush.bf16.msra.mxu0 0
    %1098 = vmatpush.bf16.msra.mxu0 0
    %1099 = vmatpush.bf16.msra.mxu0 0
    %1100 = vmatpush.bf16.msra.mxu0 0
    %1101 = vmatpush.bf16.msra.mxu0 0
    %1102 = vmatpush.bf16.msra.mxu0 %v1093
    %1103 = vmatmul.bf16.gmra.mxu0 %v1089
    %v1104 = vpop.f32.mrf.mxu0
    %v1105 = vadd.f32 0.0, %v1104
    %v1106 = vpop.f32.mrf.mxu0
    %1107 = vdwg.mxu0
    %v1109 = vsel %vm824, %v1081, 0
    %v1112 = vsel %vm1091, %v805, 0
    %1114 = vmatpush.bf16.msra.mxu0 0
    %1115 = vmatpush.bf16.msra.mxu0 0
    %1116 = vmatpush.bf16.msra.mxu0 0
    %1117 = vmatpush.bf16.msra.mxu0 0
    %1118 = vmatpush.bf16.msra.mxu0 0
    %1119 = vmatpush.bf16.msra.mxu0 0
    %1120 = vmatpush.bf16.msra.mxu0 0
    %1121 = vmatpush.bf16.msra.mxu0 %v1112
    %1122 = vmatmul.bf16.gmra.mxu0 %v1109
    %v1123 = vpop.f32.mrf.mxu0
    %v1124 = vadd.f32 0.0, %v1123
    %v1125 = vpop.f32.mrf.mxu0
    %1126 = vdwg.mxu0
    %v1128 = vsel %vm824, %v1082, 0
    %v1131 = vsel %vm1091, %v808, 0
    %1133 = vmatpush.bf16.msra.mxu0 0
    %1134 = vmatpush.bf16.msra.mxu0 0
    %1135 = vmatpush.bf16.msra.mxu0 0
    %1136 = vmatpush.bf16.msra.mxu0 0
    %1137 = vmatpush.bf16.msra.mxu0 0
    %1138 = vmatpush.bf16.msra.mxu0 0
    %1139 = vmatpush.bf16.msra.mxu0 0
    %1140 = vmatpush.bf16.msra.mxu0 %v1131
    %1141 = vmatmul.bf16.gmra.mxu0 %v1128
    %v1142 = vpop.f32.mrf.mxu0
    %v1143 = vadd.f32 0.0, %v1142
    %v1144 = vpop.f32.mrf.mxu0
    %1145 = vdwg.mxu0
    %v1147 = vsel %vm824, %v1083, 0
    %v1150 = vsel %vm1091, %v811, 0
    %1152 = vmatpush.bf16.msra.mxu0 0
    %1153 = vmatpush.bf16.msra.mxu0 0
    %1154 = vmatpush.bf16.msra.mxu0 0
    %1155 = vmatpush.bf16.msra.mxu0 0
    %1156 = vmatpush.bf16.msra.mxu0 0
    %1157 = vmatpush.bf16.msra.mxu0 0
    %1158 = vmatpush.bf16.msra.mxu0 0
    %1159 = vmatpush.bf16.msra.mxu0 %v1150
    %1160 = vmatmul.bf16.gmra.mxu0 %v1147
    %v1161 = vpop.f32.mrf.mxu0
    %v1162 = vadd.f32 0.0, %v1161
    %v1163 = vpop.f32.mrf.mxu0
    %1164 = vdwg.mxu0
    %v1166 = vsel %vm824, %v1084, 0
    %v1169 = vsel %vm1091, %v814, 0
    %1171 = vmatpush.bf16.msra.mxu0 0
    %1172 = vmatpush.bf16.msra.mxu0 0
    %1173 = vmatpush.bf16.msra.mxu0 0
    %1174 = vmatpush.bf16.msra.mxu0 0
    %1175 = vmatpush.bf16.msra.mxu0 0
    %1176 = vmatpush.bf16.msra.mxu0 0
    %1177 = vmatpush.bf16.msra.mxu0 0
    %1178 = vmatpush.bf16.msra.mxu0 %v1169
    %1179 = vmatmul.bf16.gmra.mxu0 %v1166
    %v1180 = vpop.f32.mrf.mxu0
    %v1181 = vadd.f32 0.0, %v1180
    %v1182 = vpop.f32.mrf.mxu0
    %1183 = vdwg.mxu0
    %v1185 = vsel %vm824, %v1085, 0
    %v1188 = vsel %vm1091, %v817, 0
    %1190 = vmatpush.bf16.msra.mxu0 0
    %1191 = vmatpush.bf16.msra.mxu0 0
    %1192 = vmatpush.bf16.msra.mxu0 0
    %1193 = vmatpush.bf16.msra.mxu0 0
    %1194 = vmatpush.bf16.msra.mxu0 0
    %1195 = vmatpush.bf16.msra.mxu0 0
    %1196 = vmatpush.bf16.msra.mxu0 0
    %1197 = vmatpush.bf16.msra.mxu0 %v1188
    %1198 = vmatmul.bf16.gmra.mxu0 %v1185
    %v1199 = vpop.f32.mrf.mxu0
    %v1200 = vadd.f32 0.0, %v1199
    %v1201 = vpop.f32.mrf.mxu0
    %1202 = vdwg.mxu0
    %v1204 = vsel %vm824, %v1086, 0
    %v1207 = vsel %vm1091, %v820, 0
    %1209 = vmatpush.bf16.msra.mxu0 0
    %1210 = vmatpush.bf16.msra.mxu0 0
    %1211 = vmatpush.bf16.msra.mxu0 0
    %1212 = vmatpush.bf16.msra.mxu0 0
    %1213 = vmatpush.bf16.msra.mxu0 0
    %1214 = vmatpush.bf16.msra.mxu0 0
    %1215 = vmatpush.bf16.msra.mxu0 0
    %1216 = vmatpush.bf16.msra.mxu0 %v1207
    %1217 = vmatmul.bf16.gmra.mxu0 %v1204
    %v1218 = vpop.f32.mrf.mxu0
    %v1219 = vadd.f32 0.0, %v1218
    %v1220 = vpop.f32.mrf.mxu0
    %1221 = vdwg.mxu0
    %v1223 = vsel %vm824, %v1087, 0
    %v1226 = vsel %vm1091, %v823, 0
    %1228 = vmatpush.bf16.msra.mxu0 0
    %1229 = vmatpush.bf16.msra.mxu0 0
    %1230 = vmatpush.bf16.msra.mxu0 0
    %1231 = vmatpush.bf16.msra.mxu0 0
    %1232 = vmatpush.bf16.msra.mxu0 0
    %1233 = vmatpush.bf16.msra.mxu0 0
    %1234 = vmatpush.bf16.msra.mxu0 0
    %1235 = vmatpush.bf16.msra.mxu0 %v1226
    %1236 = vmatmul.bf16.gmra.mxu0 %v1223
    %v1237 = vpop.f32.mrf.mxu0
    %v1238 = vadd.f32 0.0, %v1237
    %v1239 = vpop.f32.mrf.mxu0
    %1240 = vdwg.mxu0
    %v1241 = vpack.c.bf16 %v1105, %v1105
    %v1242 = vpack.c.bf16 %v1124, %v1124
    %v1243 = vpack.c.bf16 %v1143, %v1143
    %v1244 = vpack.c.bf16 %v1162, %v1162
    %v1245 = vpack.c.bf16 %v1181, %v1181
    %v1246 = vpack.c.bf16 %v1200, %v1200
    %v1247 = vpack.c.bf16 %v1219, %v1219
    %v1248 = vpack.c.bf16 %v1238, %v1238
    %v1251 = vpack.i.b16 %v1242, %v1241
    %v1252 = vshrl.u32 %v1241, 16
    %v1253 = vshrl.u32 %v1242, 16
    %v1254 = vpack.i.b16 %v1253, %v1252
    %v1257 = vpack.i.b16 %v1244, %v1243
    %v1258 = vshrl.u32 %v1243, 16
    %v1259 = vshrl.u32 %v1244, 16
    %v1260 = vpack.i.b16 %v1259, %v1258
    %v1263 = vpack.i.b16 %v1246, %v1245
    %v1264 = vshrl.u32 %v1245, 16
    %v1265 = vshrl.u32 %v1246, 16
    %v1266 = vpack.i.b16 %v1265, %v1264
    %v1269 = vpack.i.b16 %v1248, %v1247
    %v1270 = vshrl.u32 %v1247, 16
    %v1271 = vshrl.u32 %v1248, 16
    %v1272 = vpack.i.b16 %v1271, %v1270
    %v1275 = vunpack.c.l.s4 1983009808
    %v1276 = vunpack.c.0.s8 %v1275
    %v1277 = vperm.slane %v1251, %v1276
    %v1280 = vunpack.c.l.s4 1983009808
    %v1281 = vunpack.c.0.s8 %v1280
    %v1282 = vperm.slane %v1257, %v1281
    %v1283 = vrot.slane %v1282, 4
    %v1284 = vsel %vm128, %v1283, %v1277
    %v1285 = vrot.slane %v1277, 4
    %v1286 = vsel %vm128, %v1282, %v1285
    %v1288 = vunpack.c.l.s4 1934713408
    %v1289 = vunpack.c.0.s8 %v1288
    %v1290 = vperm.slane %v1284, %v1289
    %v1292 = vunpack.c.l.s4 1934713408
    %v1293 = vunpack.c.0.s8 %v1292
    %v1294 = vperm.slane %v1286, %v1293
    %v1295 = vrot.slane %v1290, 4
    %v1296 = vsel %vm128, 0, %v1295
    %v1297 = vrot.slane %v1294, 4
    %v1298 = vsel %vm128, 0, %v1297
    %v1301 = vunpack.c.l.s4 1983009808
    %v1302 = vunpack.c.0.s8 %v1301
    %v1303 = vperm.slane %v1254, %v1302
    %v1306 = vunpack.c.l.s4 1983009808
    %v1307 = vunpack.c.0.s8 %v1306
    %v1308 = vperm.slane %v1260, %v1307
    %v1309 = vrot.slane %v1308, 4
    %v1310 = vsel %vm128, %v1309, %v1303
    %v1311 = vrot.slane %v1303, 4
    %v1312 = vsel %vm128, %v1308, %v1311
    %v1314 = vunpack.c.l.s4 1934713408
    %v1315 = vunpack.c.0.s8 %v1314
    %v1316 = vperm.slane %v1310, %v1315
    %v1318 = vunpack.c.l.s4 1934713408
    %v1319 = vunpack.c.0.s8 %v1318
    %v1320 = vperm.slane %v1312, %v1319
    %v1321 = vrot.slane %v1316, 4
    %v1322 = vsel %vm128, 0, %v1321
    %v1323 = vrot.slane %v1320, 4
    %v1324 = vsel %vm128, 0, %v1323
    %v1327 = vunpack.c.l.s4 1983009808
    %v1328 = vunpack.c.0.s8 %v1327
    %v1329 = vperm.slane %v1263, %v1328
    %v1332 = vunpack.c.l.s4 1983009808
    %v1333 = vunpack.c.0.s8 %v1332
    %v1334 = vperm.slane %v1269, %v1333
    %v1335 = vrot.slane %v1334, 4
    %v1336 = vsel %vm128, %v1335, %v1329
    %v1337 = vrot.slane %v1329, 4
    %v1338 = vsel %vm128, %v1334, %v1337
    %v1340 = vunpack.c.l.s4 1934713408
    %v1341 = vunpack.c.0.s8 %v1340
    %v1342 = vperm.slane %v1336, %v1341
    %v1344 = vunpack.c.l.s4 1934713408
    %v1345 = vunpack.c.0.s8 %v1344
    %v1346 = vperm.slane %v1338, %v1345
    %v1347 = vrot.slane %v1342, 4
    %v1348 = vsel %vm128, 0, %v1347
    %v1349 = vrot.slane %v1346, 4
    %v1350 = vsel %vm128, 0, %v1349
    %v1353 = vunpack.c.l.s4 1983009808
    %v1354 = vunpack.c.0.s8 %v1353
    %v1355 = vperm.slane %v1266, %v1354
    %v1358 = vunpack.c.l.s4 1983009808
    %v1359 = vunpack.c.0.s8 %v1358
    %v1360 = vperm.slane %v1272, %v1359
    %v1361 = vrot.slane %v1360, 4
    %v1362 = vsel %vm128, %v1361, %v1355
    %v1363 = vrot.slane %v1355, 4
    %v1364 = vsel %vm128, %v1360, %v1363
    %v1366 = vunpack.c.l.s4 1934713408
    %v1367 = vunpack.c.0.s8 %v1366
    %v1368 = vperm.slane %v1362, %v1367
    %v1370 = vunpack.c.l.s4 1934713408
    %v1371 = vunpack.c.0.s8 %v1370
    %v1372 = vperm.slane %v1364, %v1371
    %v1373 = vrot.slane %v1368, 4
    %v1374 = vsel %vm128, 0, %v1373
    %v1375 = vrot.slane %v1372, 4
    %v1376 = vsel %vm128, 0, %v1375
    %v1377 = vsel %vm128, %v1297, %v1290
    %v1379 = vunpack.c.l.s4 1983009808
    %v1380 = vunpack.c.0.s8 %v1379
    %v1381 = vperm.slane %v1377, %v1380
    %v1382 = vrot.slane %v1298, 4
    %v1383 = vsel %vm128, %v1382, %v1296
    %v1385 = vunpack.c.l.s4 1983009808
    %v1386 = vunpack.c.0.s8 %v1385
    %v1387 = vperm.slane %v1383, %v1386
    %v1388 = vrot.slane %v1387, 4
    %v1389 = vsel %vm128, %v1388, %v1381
    %v1391 = vunpack.c.l.s4 1934713408
    %v1392 = vunpack.c.0.s8 %v1391
    %v1393 = vperm.slane %v1389, %v1392
    %v1394 = vrot.slane %v1393, 4
    %v1395 = vsel %vm128, 0, %v1394
    %v1396 = vsel %vm128, %v1323, %v1316
    %v1398 = vunpack.c.l.s4 1983009808
    %v1399 = vunpack.c.0.s8 %v1398
    %v1400 = vperm.slane %v1396, %v1399
    %v1401 = vrot.slane %v1324, 4
    %v1402 = vsel %vm128, %v1401, %v1322
    %v1404 = vunpack.c.l.s4 1983009808
    %v1405 = vunpack.c.0.s8 %v1404
    %v1406 = vperm.slane %v1402, %v1405
    %v1407 = vrot.slane %v1406, 4
    %v1408 = vsel %vm128, %v1407, %v1400
    %v1410 = vunpack.c.l.s4 1934713408
    %v1411 = vunpack.c.0.s8 %v1410
    %v1412 = vperm.slane %v1408, %v1411
    %v1413 = vrot.slane %v1412, 4
    %v1414 = vsel %vm128, 0, %v1413
    %v1415 = vsel %vm128, %v1349, %v1342
    %v1417 = vunpack.c.l.s4 1983009808
    %v1418 = vunpack.c.0.s8 %v1417
    %v1419 = vperm.slane %v1415, %v1418
    %v1420 = vrot.slane %v1350, 4
    %v1421 = vsel %vm128, %v1420, %v1348
    %v1423 = vunpack.c.l.s4 1983009808
    %v1424 = vunpack.c.0.s8 %v1423
    %v1425 = vperm.slane %v1421, %v1424
    %v1426 = vrot.slane %v1425, 4
    %v1427 = vsel %vm128, %v1426, %v1419
    %v1429 = vunpack.c.l.s4 1934713408
    %v1430 = vunpack.c.0.s8 %v1429
    %v1431 = vperm.slane %v1427, %v1430
    %v1432 = vrot.slane %v1431, 4
    %v1433 = vsel %vm128, 0, %v1432
    %v1434 = vsel %vm128, %v1375, %v1368
    %v1436 = vunpack.c.l.s4 1983009808
    %v1437 = vunpack.c.0.s8 %v1436
    %v1438 = vperm.slane %v1434, %v1437
    %v1439 = vrot.slane %v1376, 4
    %v1440 = vsel %vm128, %v1439, %v1374
    %v1442 = vunpack.c.l.s4 1983009808
    %v1443 = vunpack.c.0.s8 %v1442
    %v1444 = vperm.slane %v1440, %v1443
    %v1445 = vrot.slane %v1444, 4
    %v1446 = vsel %vm128, %v1445, %v1438
    %v1448 = vunpack.c.l.s4 1934713408
    %v1449 = vunpack.c.0.s8 %v1448
    %v1450 = vperm.slane %v1446, %v1449
    %v1451 = vrot.slane %v1450, 4
    %v1452 = vsel %vm128, 0, %v1451
    %v1455 = vpack.i.b16 %v1412, %v1393
    %v1456 = vshrl.u32 %v1393, 16
    %v1457 = vshrl.u32 %v1412, 16
    %v1458 = vpack.i.b16 %v1457, %v1456
    %v1461 = vpack.i.b16 %v1414, %v1395
    %v1462 = vshrl.u32 %v1395, 16
    %v1463 = vshrl.u32 %v1414, 16
    %v1464 = vpack.i.b16 %v1463, %v1462
    %v1467 = vpack.i.b16 %v1450, %v1431
    %v1468 = vshrl.u32 %v1431, 16
    %v1469 = vshrl.u32 %v1450, 16
    %v1470 = vpack.i.b16 %v1469, %v1468
    %v1473 = vpack.i.b16 %v1452, %v1433
    %v1474 = vshrl.u32 %v1433, 16
    %v1475 = vshrl.u32 %v1452, 16
    %v1476 = vpack.i.b16 %v1475, %v1474
    %v1477 = vunpack.c.l.b16 %v1455
    %v1478 = vunpack.c.l.b16 %v1467
    %v1479 = vpack.c.b16 %v1478, %v1477
    %v1480 = vunpack.c.l.b16 %v1458
    %v1481 = vunpack.c.l.b16 %v1470
    %v1482 = vpack.c.b16 %v1481, %v1480
    %1483 = vrot.lane.b32.xlu0 %v1482, 8
    %v1484 = vpop.permute.xlu0 %1483
    %v1485 = vunpack.c.l.b16 %v1461
    %v1486 = vunpack.c.l.b16 %v1473
    %v1487 = vpack.c.b16 %v1486, %v1485
    %1488 = vrot.lane.b32.xlu0 %v1487, 16
    %v1489 = vpop.permute.xlu0 %1488
    %v1490 = vunpack.c.l.b16 %v1464
    %v1491 = vunpack.c.l.b16 %v1476
    %v1492 = vpack.c.b16 %v1491, %v1490
    %1493 = vrot.lane.b32.xlu0 %v1492, 24
    %v1494 = vpop.permute.xlu0 %1493
    %v1497 = vsel %vm824, %v1479, %v1484
    %vm1498 = vcmask 130048
    %v1500 = vsel %vm1498, %v1497, %v1489
    %vm1501 = vcmask 195584
    %v1503 = vsel %vm1501, %v1500, %v1494
    %v1504 = vld [vmem:[%s3] sm:$0xf]
    %v1505 = vld [vmem:[%s3 + $0x4] sm:$0xf]
    %v1506 = vld [vmem:[%s3 + $0x8] sm:$0xf]
    %v1507 = vld [vmem:[%s3 + $0xc] sm:$0xf]
    %v1508 = vperm.slane %v33, 0
    %v1513 = vunpack.c.l.b16 %v1504
    %v1514 = vunpack.c.l.b16 %v1505
    %v1515 = vunpack.c.l.b16 %v1506
    %v1516 = vunpack.c.l.b16 %v1507
    %v1517 = vpack.c.b16 %v1514, %v1513
    %v1518 = vpack.c.b16 %v1516, %v1515
    %v1521 = vsel %vm55, %v1503, 0
    %1523 = vmatpush.bf16.msra.mxu0 0
    %1524 = vmatpush.bf16.msra.mxu0 0
    %1525 = vmatpush.bf16.msra.mxu0 0
    %1526 = vmatpush.bf16.msra.mxu0 0
    %1527 = vmatpush.bf16.msra.mxu0 0
    %1528 = vmatpush.bf16.msra.mxu0 0
    %1529 = vmatpush.bf16.msra.mxu0 %v1518
    %1530 = vmatpush.bf16.msra.mxu0 %v1517
    %1531 = vmatmul.bf16.gmra.mxu0 %v1521
    %v1532 = vpop.f32.mrf.mxu0
    %v1533 = vadd.f32 %v1508, %v1532
    %v1534 = vpop.f32.mrf.mxu0
    %v1535 = vadd.f32 %v1508, %v1534
    %1536 = vdwg.mxu0
    %v1537 = vadd.f32 %v1533, %v31
    %v1538 = vadd.f32 %v1535, %v32
    %v1539 = vsel %vm55, %v1537, 0.0
    %1540 = vadd.xlane.f32.xlu0 %v1539
    %v1541 = vpop.xlane.xlu0 %1540
    %v1542 = vsel %vm55, %v1538, 0.0
    %1543 = vadd.xlane.f32.xlu0 %v1542
    %v1544 = vpop.xlane.xlu0 %1543
    %v1545 = vrcp.pop 32.0
    %v1546 = vmul.f32 32.0, %v1545
    %v1547 = vsub.f32 1.0, %v1546
    %v1548 = vmul.f32 %v1545, %v1547
    %v1549 = vadd.f32 %v1545, %v1548
    %vm1550 = vweird.f32 %v1545
    %v1551 = vsel %vm1550, %v1545, %v1549
    %v1552 = vmul.f32 %v1541, %v1551
    %v1553 = vmul.f32 %v1544, %v1551
    %v1554 = vsub.f32 %v1537, %v1552
    %v1555 = vsub.f32 %v1538, %v1553
    %v1556 = vmul.f32 %v1554, %v1554
    %v1557 = vmul.f32 %v1555, %v1555
    %v1558 = vsel %vm55, %v1556, 0.0
    %1559 = vadd.xlane.f32.xlu0 %v1558
    %v1560 = vpop.xlane.xlu0 %1559
    %v1561 = vsel %vm55, %v1557, 0.0
    %1562 = vadd.xlane.f32.xlu0 %v1561
    %v1563 = vpop.xlane.xlu0 %1562
    %v1564 = vmul.f32 %v1560, %v1551
    %v1565 = vmul.f32 %v1563, %v1551
    %v1566 = vadd.f32 %v1564, 1e-05
    %v1567 = vadd.f32 %v1565, 1e-05
    %v1568 = vrsqrt.pop %v1566
    %v1569 = vmul.f32 %v1568, %v1566
    %v1570 = vmul.f32 %v1569, %v1568
    %v1571 = vmul.f32 0.5, %v1570
    %v1572 = vsub.f32 1.5, %v1571
    %v1573 = vmul.f32 %v1568, %v1572
    %vm1574 = vweird.f32 %v1566
    %vm1575 = vweird.f32 %v1568
    %vm1576 = vmor %vm1574, %vm1575
    %v1577 = vsel %vm1576, %v1568, %v1573
    %v1578 = vrsqrt.pop %v1567
    %v1579 = vmul.f32 %v1578, %v1567
    %v1580 = vmul.f32 %v1579, %v1578
    %v1581 = vmul.f32 0.5, %v1580
    %v1582 = vsub.f32 1.5, %v1581
    %v1583 = vmul.f32 %v1578, %v1582
    %vm1584 = vweird.f32 %v1567
    %vm1585 = vweird.f32 %v1578
    %vm1586 = vmor %vm1584, %vm1585
    %v1587 = vsel %vm1586, %v1578, %v1583
    %v1588 = vmul.f32 %v1554, %v1577
    %v1589 = vmul.f32 %v1555, %v1587
    %v1590 = vperm.slane %v33, 1
    %v1591 = vmul.f32 %v1588, %v1590
    %v1592 = vmul.f32 %v1589, %v1590
    %v1593 = vperm.slane %v33, 2
    %v1594 = vadd.f32 %v1591, %v1593
    %v1595 = vadd.f32 %v1592, %v1593
    %v1596 = vpack.c.bf16 %v1595, %v1594
    %v1597 = vld [vmem:[%s4] sm:$0xf]
    %v1598 = vld [vmem:[%s4 + $0x4] sm:$0xf]
    %v1599 = vld [vmem:[%s4 + $0x8] sm:$0xf]
    %v1600 = vld [vmem:[%s4 + $0xc] sm:$0xf]
    %v1601 = vld [vmem:[%s5] sm:$0x1]
    %v1603 = vperm.slane %v1601, 0
    %v1609 = vunpack.c.l.b16 %v1597
    %v1610 = vunpack.c.l.b16 %v1598
    %v1611 = vunpack.c.l.b16 %v1599
    %v1612 = vunpack.c.l.b16 %v1600
    %v1613 = vpack.c.b16 %v1610, %v1609
    %v1614 = vpack.c.b16 %v1612, %v1611
    %v1618 = vsel %vm55, %v1596, 0
    %1620 = vmatpush.bf16.msra.mxu0 0
    %1621 = vmatpush.bf16.msra.mxu0 0
    %1622 = vmatpush.bf16.msra.mxu0 0
    %1623 = vmatpush.bf16.msra.mxu0 0
    %1624 = vmatpush.bf16.msra.mxu0 0
    %1625 = vmatpush.bf16.msra.mxu0 0
    %1626 = vmatpush.bf16.msra.mxu0 %v1614
    %1627 = vmatpush.bf16.msra.mxu0 %v1613
    %1628 = vmatmul.bf16.gmra.mxu0 %v1618
    %v1629 = vpop.f32.mrf.mxu0
    %v1630 = vadd.f32 %v1603, %v1629
    %v1631 = vpop.f32.mrf.mxu0
    %v1632 = vadd.f32 %v1603, %v1631
    %1633 = vdwg.mxu0
    %v1634 = vmul.f32 %v1630, 1.702
    %v1635 = vmul.f32 %v1632, 1.702
    %v1636 = vxor.u32 %v1634, 2147483648
    %v1637 = vxor.u32 %v1635, 2147483648
    %v1638 = vmul.f32 %v1636, 1.442695
    %v1639 = vpow.pop %v1638
    %v1640 = vmul.f32 %v1637, 1.442695
    %v1641 = vpow.pop %v1640
    %v1642 = vadd.f32 %v1639, 1.0
    %v1643 = vadd.f32 %v1641, 1.0
    %v1644 = vrcp.pop %v1642
    %v1645 = vmul.f32 %v1642, %v1644
    %v1646 = vsub.f32 1.0, %v1645
    %v1647 = vmul.f32 %v1644, %v1646
    %v1648 = vadd.f32 %v1644, %v1647
    %vm1649 = vweird.f32 %v1642
    %vm1650 = vweird.f32 %v1644
    %vm1651 = vmor %vm1649, %vm1650
    %v1652 = vsel %vm1651, %v1644, %v1648
    %v1653 = vand.u32 2147483647, %v1642
    %vm1654 = vcmp.eq.f32.partialorder %v1653, 8.507059e+37
    %v1655 = vand.u32 %v1642, 2147483648
    %v1656 = vor.u32 1.1754944e-38, %v1655
    %v1657 = vsel %vm1654, %v1656, %v1652
    %v1658 = vmul.f32 1.0, %v1657
    %v1659 = vrcp.pop %v1643
    %v1660 = vmul.f32 %v1643, %v1659
    %v1661 = vsub.f32 1.0, %v1660
    %v1662 = vmul.f32 %v1659, %v1661
    %v1663 = vadd.f32 %v1659, %v1662
    %vm1664 = vweird.f32 %v1643
    %vm1665 = vweird.f32 %v1659
    %vm1666 = vmor %vm1664, %vm1665
    %v1667 = vsel %vm1666, %v1659, %v1663
    %v1668 = vand.u32 2147483647, %v1643
    %vm1669 = vcmp.eq.f32.partialorder %v1668, 8.507059e+37
    %v1670 = vand.u32 %v1643, 2147483648
    %v1671 = vor.u32 1.1754944e-38, %v1670
    %v1672 = vsel %vm1669, %v1671, %v1667
    %v1673 = vmul.f32 1.0, %v1672
    %v1674 = vmul.f32 %v1630, %v1658
    %v1675 = vmul.f32 %v1632, %v1673
    %v1676 = vpack.c.bf16 %v1675, %v1674
    %v1677 = vld [vmem:[%s6] sm:$0xf]
    %v1678 = vld [vmem:[%s6 + $0x4] sm:$0xf]
    %v1679 = vld [vmem:[%s6 + $0x8] sm:$0xf]
    %v1680 = vld [vmem:[%s6 + $0xc] sm:$0xf]
    %v1681 = vld [vmem:[%s6 + $0x10] sm:$0xf]
    %v1682 = vld [vmem:[%s6 + $0x14] sm:$0xf]
    %v1683 = vld [vmem:[%s6 + $0x18] sm:$0xf]
    %v1684 = vld [vmem:[%s6 + $0x1c] sm:$0xf]
    %v1685 = vld [vmem:[%s6 + $0x20] sm:$0xf]
    %v1686 = vld [vmem:[%s6 + $0x24] sm:$0xf]
    %v1687 = vld [vmem:[%s6 + $0x28] sm:$0xf]
    %v1688 = vld [vmem:[%s6 + $0x2c] sm:$0xf]
    %v1689 = vld [vmem:[%s6 + $0x30] sm:$0xf]
    %v1690 = vld [vmem:[%s6 + $0x34] sm:$0xf]
    %v1691 = vld [vmem:[%s6 + $0x38] sm:$0xf]
    %v1692 = vld [vmem:[%s6 + $0x3c] sm:$0xf]
    %v1693 = vperm.slane %v33, 3
    %v1710 = vunpack.c.l.b16 %v1677
    %v1711 = vunpack.c.l.b16 %v1678
    %v1712 = vunpack.c.l.b16 %v1679
    %v1713 = vunpack.c.l.b16 %v1680
    %v1714 = vunpack.c.l.b16 %v1681
    %v1715 = vunpack.c.l.b16 %v1682
    %v1716 = vunpack.c.l.b16 %v1683
    %v1717 = vunpack.c.l.b16 %v1684
    %v1718 = vunpack.c.l.b16 %v1685
    %v1719 = vunpack.c.l.b16 %v1686
    %v1720 = vunpack.c.l.b16 %v1687
    %v1721 = vunpack.c.l.b16 %v1688
    %v1722 = vunpack.c.l.b16 %v1689
    %v1723 = vunpack.c.l.b16 %v1690
    %v1724 = vunpack.c.l.b16 %v1691
    %v1725 = vunpack.c.l.b16 %v1692
    %v1726 = vpack.c.b16 %v1711, %v1710
    %v1727 = vpack.c.b16 %v1713, %v1712
    %v1728 = vpack.c.b16 %v1715, %v1714
    %v1729 = vpack.c.b16 %v1717, %v1716
    %v1730 = vpack.c.b16 %v1719, %v1718
    %v1731 = vpack.c.b16 %v1721, %v1720
    %v1732 = vpack.c.b16 %v1723, %v1722
    %v1733 = vpack.c.b16 %v1725, %v1724
    %1742 = vmatpush.bf16.msra.mxu0 %v1733
    %1743 = vmatpush.bf16.msra.mxu0 %v1732
    %1744 = vmatpush.bf16.msra.mxu0 %v1731
    %1745 = vmatpush.bf16.msra.mxu0 %v1730
    %1746 = vmatpush.bf16.msra.mxu0 %v1729
    %1747 = vmatpush.bf16.msra.mxu0 %v1728
    %1748 = vmatpush.bf16.msra.mxu0 %v1727
    %1749 = vmatpush.bf16.msra.mxu0 %v1726
    %1750 = vmatmul.bf16.gmra.mxu0 %v1676
    %v1751 = vpop.f32.mrf.mxu0
    %v1752 = vadd.f32 %v1693, %v1751
    %v1753 = vpop.f32.mrf.mxu0
    %v1754 = vadd.f32 %v1693, %v1753
    %1755 = vdwg.mxu0
    %v1756 = vadd.f32 %v1752, %v1594
    %v1757 = vadd.f32 %v1754, %v1595
    %v1758 = vsel %vm55, %v1756, 0.0
    %1759 = vadd.xlane.f32.xlu0 %v1758
    %v1760 = vpop.xlane.xlu0 %1759
    %v1761 = vsel %vm55, %v1757, 0.0
    %1762 = vadd.xlane.f32.xlu0 %v1761
    %v1763 = vpop.xlane.xlu0 %1762
    %v1764 = vmul.f32 %v1760, %v1551
    %v1765 = vmul.f32 %v1763, %v1551
    %v1766 = vsub.f32 %v1756, %v1764
    %v1767 = vsub.f32 %v1757, %v1765
    %v1768 = vmul.f32 %v1766, %v1766
    %v1769 = vmul.f32 %v1767, %v1767
    %v1770 = vsel %vm55, %v1768, 0.0
    %1771 = vadd.xlane.f32.xlu0 %v1770
    %v1772 = vpop.xlane.xlu0 %1771
    %v1773 = vsel %vm55, %v1769, 0.0
    %1774 = vadd.xlane.f32.xlu0 %v1773
    %v1775 = vpop.xlane.xlu0 %1774
    %v1776 = vmul.f32 %v1772, %v1551
    %v1777 = vmul.f32 %v1775, %v1551
    %v1778 = vadd.f32 %v1776, 1e-05
    %v1779 = vadd.f32 %v1777, 1e-05
    %v1780 = vrsqrt.pop %v1778
    %v1781 = vmul.f32 %v1780, %v1778
    %v1782 = vmul.f32 %v1781, %v1780
    %v1783 = vmul.f32 0.5, %v1782
    %v1784 = vsub.f32 1.5, %v1783
    %v1785 = vmul.f32 %v1780, %v1784
    %vm1786 = vweird.f32 %v1778
    %vm1787 = vweird.f32 %v1780
    %vm1788 = vmor %vm1786, %vm1787
    %v1789 = vsel %vm1788, %v1780, %v1785
    %v1790 = vrsqrt.pop %v1779
    %v1791 = vmul.f32 %v1790, %v1779
    %v1792 = vmul.f32 %v1791, %v1790
    %v1793 = vmul.f32 0.5, %v1792
    %v1794 = vsub.f32 1.5, %v1793
    %v1795 = vmul.f32 %v1790, %v1794
    %vm1796 = vweird.f32 %v1779
    %vm1797 = vweird.f32 %v1790
    %vm1798 = vmor %vm1796, %vm1797
    %v1799 = vsel %vm1798, %v1790, %v1795
    %v1800 = vmul.f32 %v1766, %v1789
    %v1801 = vmul.f32 %v1767, %v1799
    %v1802 = vperm.slane %v33, 4
    %v1803 = vmul.f32 %v1800, %v1802
    %v1804 = vmul.f32 %v1801, %v1802
    %v1805 = vperm.slane %v33, 5
    %v1806 = vadd.f32 %v1803, %v1805
    %v1807 = vadd.f32 %v1804, %v1805
    %1808 = vst.msk [vmem:[#allocation2] sm:$0xff] %vm55, %v1806
    %1809 = vst.msk [vmem:[#allocation2 + $0x8] sm:$0xff] %vm55, %v1807
    // Predicated region
    $region34: #{tpu_custom_call.1} parent=1 // pred_check
      _
    $region35: #{tpu_custom_call.1} parent=1 // pred_check_branch
      %1811 = sbr.rel (0) target = $region37
    $region36: #{tpu_custom_call.1} parent=1 // pred_region
      %1813 = vsyncadd [#allocation3], 0
      %s1814 = sshll.u32 [#allocation2], 4
      %s1815 = int_to_ptr.vmem [resolvable:$true] %s1814
      %s1816 = sshll.u32 %s8, 4
      %s1817 = int_to_ptr.hbm [resolvable:$true] %s1816
      %1822 = dma.vmem_to_hbm [thread:$0]  %s1815, 256, %s1817, [#allocation3], 128, 128, 8
    $region37: #{tpu_custom_call.1} parent=1 // pred_fallthru
      _
    // Predicated region
    $region38: #{tpu_custom_call.1} parent=1 // pred_check
      _
    $region39: #{tpu_custom_call.1} parent=1 // pred_check_branch
      %1824 = sbr.rel (0) target = $region41
    $region40: #{tpu_custom_call.1} parent=1 // pred_region
      %1826 = dma.done [#allocation3], 256
    $region41: #{tpu_custom_call.1} parent=1 // pred_fallthru
      _
    %1827 = vsyncpa [#allocation3], 1

</llo_original>
